<compile_context>
chip_gen: v7x
topology: tpu7x:2x2x1
jax: 0.10.0
libtpu: 0.0.40
codegen_flags: <defaults>
</compile_context>

<pallas_src>
import math
from functools import partial

import jax
import jax.numpy as jnp
from jax.experimental import pallas as pl
from jax.experimental.pallas import tpu as pltpu

LANE = 128      # TPU lane width: logits padded to this for dense (unmasked) stores
SUBLANE = 8     # f32 sublane tile: Tp rounded up to this so reshapes are tile-aligned


def _round_up(x, m):
    return (x + m - 1) // m * m


# ---------------------------------------------------------------------------
# Pallas kernel: one grid step == one full autoregressive step (whole batch).
# Token buffer persists in VMEM scratch across grid steps.
# ---------------------------------------------------------------------------
def gpt2_autoreg_kernel(tok_ref,                      # (B, Tp, 2P) f32 padded initial tokens
                        we_w_ref, we_b_ref,           # embed_fn: (2P, E), (1, E)
                        g1_ref, b1_ref,               # ln_1
                        wqkv_ref, bqkv_ref,           # fused c_attn: (E, 3E), (1, 3E)
                        wap_ref, bap_ref,             # attn c_proj
                        g2_ref, b2_ref,               # ln_2
                        wfc_ref, bfc_ref,             # mlp c_fc
                        wmp_ref, bmp_ref,             # mlp c_proj
                        gf_ref, bf_ref,               # ln_f
                        wc_ref, bc_ref,               # cls head padded: (E, LANE), (1, LANE)
                        sel_ref,                      # (LANE, 2P) constant: succ -> next token
                        logits_ref,                   # out block (B, LANE) f32
                        attn_ref,                     # out block (B, Tp, Tp) f32
                        tok_scratch,                  # VMEM (B, Tp, 2P): persistent token buffer
                        *, T0):
    B, Tp, D = tok_scratch.shape
    E = we_w_ref.shape[1]
    t = pl.program_id(0)
    L = T0 + t                       # current valid sequence length

    @pl.when(t == 0)
    def _():
        tok_scratch[...] = tok_ref[...]

    def layernorm(v, g_ref, b_ref):
        mu = jnp.mean(v, axis=-1, keepdims=True)
        var = jnp.mean(jnp.square(v - mu), axis=-1, keepdims=True)
        return (v - mu) * jax.lax.rsqrt(var + 1e-5) * g_ref[...] + b_ref[...]

    # ---- embed (nn.Linear) over the fused batch: (B*Tp) rows fill sublanes ----
    x = tok_scratch[...].reshape(B * Tp, D)
    h = jnp.dot(x, we_w_ref[...], preferred_element_type=jnp.float32) + we_b_ref[...]
    # gpt2.wpe frozen at zero -> no positional term; dropout inert (eval).

    # ---- attention block: single fused q/k/v projection ----
    hn = layernorm(h, g1_ref, b1_ref)
    qkv = jnp.dot(hn, wqkv_ref[...], preferred_element_type=jnp.float32) + bqkv_ref[...]
    qkv3 = qkv.reshape(B, Tp, 3 * E)
    q3 = qkv3[..., 0 * E:1 * E]
    k3 = qkv3[..., 1 * E:2 * E]
    v3 = qkv3[..., 2 * E:3 * E]

    scores = jnp.einsum('bqd,bkd->bqk', q3, k3,
                        preferred_element_type=jnp.float32) * (1.0 / math.sqrt(E))
    row = jax.lax.broadcasted_iota(jnp.int32, (Tp, Tp), 0)
    col = jax.lax.broadcasted_iota(jnp.int32, (Tp, Tp), 1)
    # Large-but-finite mask constant (masked probs are exactly 0 either way and
    # cannot become NaN after the row-max subtraction).
    scores = jnp.where((row >= col)[None, :, :], scores, jnp.float32(-1e30))
    scores = scores - jnp.max(scores, axis=-1, keepdims=True)
    p = jnp.exp(scores)
    denom = jnp.sum(p, axis=-1, keepdims=True)
    p = p * pl.reciprocal(denom, approx=True)       # EUP vrcp; VALU stays free
    attn_ref[...] = p                               # softmax attention weights

    # ---- only the last VALID row (q == L-1) is needed past the softmax ----
    sel_q = (jax.lax.broadcasted_iota(jnp.int32, (1, Tp, 1), 1)
             == (L - 1)).astype(jnp.float32)        # one-hot over query axis
    h3 = h.reshape(B, Tp, E)
    h_last = jnp.sum(h3 * sel_q, axis=1)                              # (B, E)
    p_last = jnp.sum(p * sel_q, axis=1, keepdims=True)                # (B, 1, Tp)
    a_last = jnp.einsum('bqk,bkd->bqd', p_last, v3,
                        preferred_element_type=jnp.float32)[:, 0, :]  # (B, E)

    a_last = (jnp.dot(a_last, wap_ref[...], preferred_element_type=jnp.float32)
              + bap_ref[...])
    h2 = h_last + a_last

    # ---- MLP block (last row only) ----
    hn2 = layernorm(h2, g2_ref, b2_ref)
    m = jnp.dot(hn2, wfc_ref[...], preferred_element_type=jnp.float32) + bfc_ref[...]
    # gelu_new: 0.5*x*(1+tanh(sqrt(2/pi)*(x + 0.044715*x^3)))  (f32: v5e has no
    # bf16 EUP/VPU path)
    m = 0.5 * m * (1.0 + jnp.tanh(math.sqrt(2.0 / math.pi) * (m + 0.044715 * m * m * m)))
    m = jnp.dot(m, wmp_ref[...], preferred_element_type=jnp.float32) + bmp_ref[...]
    h2 = h2 + m

    # ---- final LN + cls head (padded to LANE columns -> dense vst) ----
    hf = layernorm(h2, gf_ref, bf_ref)
    logits_pad = (jnp.dot(hf, wc_ref[...], preferred_element_type=jnp.float32)
                  + bc_ref[...])                                      # (B, LANE)
    logits_ref[...] = logits_pad

    # ---- fused next-token update: succ = (logits > 0); token = [0_P, succ] ----
    # sel matrix maps cls column j -> token column P+j; padded cls columns
    # (>= P) hit zero rows of sel, so no lane slicing/concat is needed.
    succ_full = (logits_pad > 0).astype(jnp.float32)                  # (B, LANE)
    succ_token = jnp.dot(succ_full, sel_ref[...],
                         preferred_element_type=jnp.float32)          # (B, 2P)
    row_idx = jax.lax.broadcasted_iota(jnp.int32, (B, Tp, D), 1)
    tok_scratch[...] = jnp.where(row_idx == L, succ_token[:, None, :],
                                 tok_scratch[...])


# ---------------------------------------------------------------------------
# Wrapper
# ---------------------------------------------------------------------------
_KERNEL_WEIGHT_ORDER = ["we_w", "we_b", "g1", "b1", "wqkv", "bqkv", "wap", "bap",
                        "g2", "b2", "wfc", "bfc", "wmp", "bmp", "gf", "bf",
                        "wc_pad", "bc_pad", "sel"]


def pack_params(params):
    """Fuse q/k/v into one (E,3E) matmul, zero-pad the cls head to LANE cols,
    and build the constant succ -> next-token selection matrix."""
    E = params["we_w"].shape[1]
    P = params["wc"].shape[1]
    D = 2 * P
    packed = dict(params)
    packed["wqkv"] = jnp.concatenate([params["wq"], params["wk"], params["wv"]], axis=1)
    packed["bqkv"] = jnp.concatenate([params["bq"], params["bk"], params["bv"]], axis=1)
    packed["wc_pad"] = jnp.zeros((E, LANE), jnp.float32).at[:, :P].set(params["wc"])
    packed["bc_pad"] = jnp.zeros((1, LANE), jnp.float32).at[:, :P].set(params["bc"])
    packed["sel"] = (jnp.zeros((LANE, D), jnp.float32)
                     .at[jnp.arange(P), P + jnp.arange(P)].set(1.0))
    # Note: for larger E on v6e/v7x, pre-cast matmul weights to bf16 (keep f32 acc).
    return [packed[n] for n in _KERNEL_WEIGHT_ORDER]


@partial(jax.jit, static_argnames=("num_steps", "T0"))
def _gpt2_autoreg(tokens_buf, weights, num_steps, T0):
    """All autoregressive steps in ONE pallas_call (grid = (num_steps,))."""
    B, Tp, D = tokens_buf.shape
    kernel = partial(gpt2_autoreg_kernel, T0=T0)
    grid_spec = pltpu.PrefetchScalarGridSpec(
        num_scalar_prefetch=0,
        grid=(num_steps,),
        in_specs=[pl.BlockSpec((B, Tp, D), lambda t: (0, 0, 0))]
                 + [pl.BlockSpec(w.shape, lambda t: (0, 0)) for w in weights],
        out_specs=(pl.BlockSpec((None, B, LANE), lambda t: (t, 0, 0)),
                   pl.BlockSpec((None, B, Tp, Tp), lambda t: (t, 0, 0, 0))),
        scratch_shapes=[pltpu.VMEM((B, Tp, D), jnp.float32)],
    )
    out_shape = (jax.ShapeDtypeStruct((num_steps, B, LANE), jnp.float32),
                 jax.ShapeDtypeStruct((num_steps, B, Tp, Tp), jnp.float32))
    return pl.pallas_call(
        kernel,
        grid_spec=grid_spec,
        out_shape=out_shape,
        compiler_params=pltpu.CompilerParams(
            dimension_semantics=("arbitrary",)),   # sequential carry via scratch
    )(tokens_buf, *weights)


def autoreg_forward(tokens, params, num_steps, labels=None):
    """Mirrors AutoregGPT2Model.forward. tokens: (B, T0, 2P) int."""
    B, T0, D = tokens.shape
    P = D // 2
    weights = pack_params(params)

    Tp = _round_up(T0 + num_steps, SUBLANE)        # fixed shapes -> one compile
    tokens_buf = jnp.zeros((B, Tp, D), jnp.float32)
    tokens_buf = tokens_buf.at[:, :T0, :].set(tokens.astype(jnp.float32))

    logits_steps, attn_steps = _gpt2_autoreg(tokens_buf, weights, num_steps, T0)
    all_logits = jnp.transpose(logits_steps[:, :, :P], (1, 0, 2))     # (B, S, P)
    # HF returns per-step (B, n_head=1, T, T) attention; slice valid submatrices.
    attn_wts = tuple(attn_steps[t, :, None, :T0 + t, :T0 + t] for t in range(num_steps))

    loss = None
    if labels is not None:
        x = all_logits
        y = labels.astype(jnp.float32)
        # BCEWithLogitsLoss (mean reduction), numerically stable form
        loss = jnp.mean(jnp.maximum(x, 0.0) - x * y + jnp.log1p(jnp.exp(-jnp.abs(x))))
    return {"loss": loss, "logits": all_logits, "attn_wts": attn_wts}


def init_params(key, num_props, embed_dim):
    """Deterministic synthetic init (normal * 0.02), shapes from the module __init__."""
    D = 2 * num_props
    E = embed_dim
    P = num_props
    ks = jax.random.split(key, 16)

    def w(k, shape):
        return 0.02 * jax.random.normal(k, shape, dtype=jnp.float32)

    return {
        # embed_fn nn.Linear(2P, E): pre-transposed so kernel does x @ W
        "we_w": w(ks[0], (D, E)), "we_b": w(ks[1], (1, E)),
        # ln_1
        "g1": jnp.ones((1, E), jnp.float32), "b1": jnp.zeros((1, E), jnp.float32),
        # c_attn (Conv1D, E -> 3E) split into q/k/v columns (fused in pack_params)
        "wq": w(ks[2], (E, E)), "bq": w(ks[3], (1, E)),
        "wk": w(ks[4], (E, E)), "bk": w(ks[5], (1, E)),
        "wv": w(ks[6], (E, E)), "bv": w(ks[7], (1, E)),
        # attn c_proj
        "wap": w(ks[8], (E, E)), "bap": w(ks[9], (1, E)),
        # ln_2
        "g2": jnp.ones((1, E), jnp.float32), "b2": jnp.zeros((1, E), jnp.float32),
        # mlp c_fc / c_proj
        "wfc": w(ks[10], (E, 4 * E)), "bfc": w(ks[11], (1, 4 * E)),
        "wmp": w(ks[12], (4 * E, E)), "bmp": w(ks[13], (1, E)),
        # ln_f
        "gf": jnp.ones((1, E), jnp.float32), "bf": jnp.zeros((1, E), jnp.float32),
        # cls_head nn.Linear(E, P): pre-transposed (padded to LANE in pack_params)
        "wc": w(ks[14], (E, P)), "bc": w(ks[15], (1, P)),
    }


if __name__ == "__main__":
    B = 2
    num_props = 4            # P
    num_steps = 3
    T0 = 8
    embed_dim = 2 * num_props  # default: embed_dim = 2 * num_props

    root = jax.random.PRNGKey(0)
    k_param, k_tok, k_lab = jax.random.split(root, 3)

    params = init_params(k_param, num_props, embed_dim)
    tokens = jax.random.bernoulli(k_tok, 0.5, (B, T0, 2 * num_props)).astype(jnp.int32)
    labels = jax.random.bernoulli(k_lab, 0.5, (B, num_steps, num_props)).astype(jnp.int32)

    out = autoreg_forward(tokens, params, num_steps, labels=labels)

    jax.block_until_ready(out["logits"])
    jax.block_until_ready(out["loss"])
    for a in out["attn_wts"]:
        jax.block_until_ready(a)

    assert out["logits"].shape == (B, num_steps, num_props)
    assert len(out["attn_wts"]) == num_steps
    for t, a in enumerate(out["attn_wts"]):
        assert a.shape == (B, 1, T0 + t, T0 + t)
    assert jnp.isfinite(out["loss"])

    print("KERNEL_OK")
</pallas_src>

<mosaic_0001>
module attributes {stable_mosaic.version = 11 : i64} {
  func.func @gpt2_autoreg_kernel(%arg0: i32, %arg1: memref<2x16x8xf32, #tpu.memory_space<vmem>>, %arg2: memref<8x8xf32, #tpu.memory_space<vmem>>, %arg3: memref<1x8xf32, #tpu.memory_space<vmem>>, %arg4: memref<1x8xf32, #tpu.memory_space<vmem>>, %arg5: memref<1x8xf32, #tpu.memory_space<vmem>>, %arg6: memref<8x24xf32, #tpu.memory_space<vmem>>, %arg7: memref<1x24xf32, #tpu.memory_space<vmem>>, %arg8: memref<8x8xf32, #tpu.memory_space<vmem>>, %arg9: memref<1x8xf32, #tpu.memory_space<vmem>>, %arg10: memref<1x8xf32, #tpu.memory_space<vmem>>, %arg11: memref<1x8xf32, #tpu.memory_space<vmem>>, %arg12: memref<8x32xf32, #tpu.memory_space<vmem>>, %arg13: memref<1x32xf32, #tpu.memory_space<vmem>>, %arg14: memref<32x8xf32, #tpu.memory_space<vmem>>, %arg15: memref<1x8xf32, #tpu.memory_space<vmem>>, %arg16: memref<1x8xf32, #tpu.memory_space<vmem>>, %arg17: memref<1x8xf32, #tpu.memory_space<vmem>>, %arg18: memref<8x128xf32, #tpu.memory_space<vmem>>, %arg19: memref<1x128xf32, #tpu.memory_space<vmem>>, %arg20: memref<128x8xf32, #tpu.memory_space<vmem>>, %arg21: memref<1x2x128xf32, #tpu.memory_space<vmem>>, %arg22: memref<1x2x16x16xf32, #tpu.memory_space<vmem>>, %arg23: memref<2x16x8xf32, #tpu.memory_space<vmem>>) attributes {dimension_semantics = [#tpu.dimension_semantics<arbitrary>], iteration_bounds = array<i64: 3>, scalar_prefetch = 0 : i64, scratch_operands = 1 : i64, tpu.core_type = #tpu.core_type<tc>, window_params = [{pipeline_mode = #tpu.pipeline_mode<synchronous>, transform_indices = @transform_0, window_bounds = array<i64: 2, 16, 8>}, {pipeline_mode = #tpu.pipeline_mode<synchronous>, transform_indices = @transform_1, window_bounds = array<i64: 8, 8>}, {pipeline_mode = #tpu.pipeline_mode<synchronous>, transform_indices = @transform_2, window_bounds = array<i64: 1, 8>}, {pipeline_mode = #tpu.pipeline_mode<synchronous>, transform_indices = @transform_3, window_bounds = array<i64: 1, 8>}, {pipeline_mode = #tpu.pipeline_mode<synchronous>, transform_indices = @transform_4, window_bounds = array<i64: 1, 8>}, {pipeline_mode = #tpu.pipeline_mode<synchronous>, transform_indices = @transform_5, window_bounds = array<i64: 8, 24>}, {pipeline_mode = #tpu.pipeline_mode<synchronous>, transform_indices = @transform_6, window_bounds = array<i64: 1, 24>}, {pipeline_mode = #tpu.pipeline_mode<synchronous>, transform_indices = @transform_7, window_bounds = array<i64: 8, 8>}, {pipeline_mode = #tpu.pipeline_mode<synchronous>, transform_indices = @transform_8, window_bounds = array<i64: 1, 8>}, {pipeline_mode = #tpu.pipeline_mode<synchronous>, transform_indices = @transform_9, window_bounds = array<i64: 1, 8>}, {pipeline_mode = #tpu.pipeline_mode<synchronous>, transform_indices = @transform_10, window_bounds = array<i64: 1, 8>}, {pipeline_mode = #tpu.pipeline_mode<synchronous>, transform_indices = @transform_11, window_bounds = array<i64: 8, 32>}, {pipeline_mode = #tpu.pipeline_mode<synchronous>, transform_indices = @transform_12, window_bounds = array<i64: 1, 32>}, {pipeline_mode = #tpu.pipeline_mode<synchronous>, transform_indices = @transform_13, window_bounds = array<i64: 32, 8>}, {pipeline_mode = #tpu.pipeline_mode<synchronous>, transform_indices = @transform_14, window_bounds = array<i64: 1, 8>}, {pipeline_mode = #tpu.pipeline_mode<synchronous>, transform_indices = @transform_15, window_bounds = array<i64: 1, 8>}, {pipeline_mode = #tpu.pipeline_mode<synchronous>, transform_indices = @transform_16, window_bounds = array<i64: 1, 8>}, {pipeline_mode = #tpu.pipeline_mode<synchronous>, transform_indices = @transform_17, window_bounds = array<i64: 8, 128>}, {pipeline_mode = #tpu.pipeline_mode<synchronous>, transform_indices = @transform_18, window_bounds = array<i64: 1, 128>}, {pipeline_mode = #tpu.pipeline_mode<synchronous>, transform_indices = @transform_19, window_bounds = array<i64: 128, 8>}, {transform_indices = @transform_20, window_bounds = array<i64: 1, 2, 128>}, {transform_indices = @transform_21, window_bounds = array<i64: 1, 2, 16, 16>}]} {
    %c8_i32 = arith.constant 8 : i32
    %0 = arith.addi %c8_i32, %arg0 : i32
    %c0_i32 = arith.constant 0 : i32
    %1 = arith.cmpi eq, %arg0, %c0_i32 : i32
    %2 = arith.extui %1 : i1 to i32
    %c0_i32_0 = arith.constant 0 : i32
    %3 = arith.cmpi ne, %2, %c0_i32_0 : i32
    scf.if %3 {
      %c0_88 = arith.constant 0 : index
      %c0_89 = arith.constant 0 : index
      %c0_90 = arith.constant 0 : index
      %185 = vector.load %arg1[%c0_88, %c0_89, %c0_90] : memref<2x16x8xf32, #tpu.memory_space<vmem>>, vector<2x16x8xf32>
      %c0_91 = arith.constant 0 : index
      %c0_92 = arith.constant 0 : index
      %c0_93 = arith.constant 0 : index
      %186 = vector.load %arg23[%c0_91, %c0_92, %c0_93] : memref<2x16x8xf32, #tpu.memory_space<vmem>>, vector<2x16x8xf32>
      tpu.vector_store %arg23[%c0_91, %c0_92, %c0_93], %185 {strides = array<i32>} : memref<2x16x8xf32, #tpu.memory_space<vmem>>, vector<2x16x8xf32>,
    } else {
    }
    %c0 = arith.constant 0 : index
    %c0_1 = arith.constant 0 : index
    %c0_2 = arith.constant 0 : index
    %4 = vector.load %arg23[%c0, %c0_1, %c0_2] : memref<2x16x8xf32, #tpu.memory_space<vmem>>, vector<2x16x8xf32>
    %5 = vector.shape_cast %4 : vector<2x16x8xf32> to vector<32x8xf32>
    %c0_3 = arith.constant 0 : index
    %c0_4 = arith.constant 0 : index
    %6 = vector.load %arg2[%c0_3, %c0_4] : memref<8x8xf32, #tpu.memory_space<vmem>>, vector<8x8xf32>
    %cst = arith.constant dense<0.000000e+00> : vector<32x8xf32>
    %7 = tpu.matmul %5, %6, %cst {dimension_numbers = #tpu.dot_dimension_numbers<[1], [0], [0], [1], [0, 0, 1, 1], [], []>} : vector<32x8xf32>, vector<8x8xf32>, vector<32x8xf32> -> vector<32x8xf32>
    %c0_5 = arith.constant 0 : index
    %c0_6 = arith.constant 0 : index
    %8 = vector.load %arg3[%c0_5, %c0_6] : memref<1x8xf32, #tpu.memory_space<vmem>>, vector<1x8xf32>
    %9 = vector.broadcast %8 : vector<1x8xf32> to vector<32x8xf32>
    %10 = arith.addf %7, %9 : vector<32x8xf32>
    %cst_7 = arith.constant dense<0.000000e+00> : vector<32xf32>
    %11 = vector.multi_reduction <add>, %10, %cst_7 [1] : vector<32x8xf32> to vector<32xf32>
    %12 = vector.shape_cast %11 : vector<32xf32> to vector<32x1xf32>
    %cst_8 = arith.constant 8.000000e+00 : f32
    %13 = vector.broadcast %cst_8 : f32 to vector<32x1xf32>
    %14 = arith.divf %12, %13 : vector<32x1xf32>
    %15 = vector.broadcast %14 : vector<32x1xf32> to vector<32x8xf32>
    %16 = arith.subf %10, %15 : vector<32x8xf32>
    %17 = arith.mulf %16, %16 : vector<32x8xf32>
    %cst_9 = arith.constant dense<0.000000e+00> : vector<32xf32>
    %18 = vector.multi_reduction <add>, %17, %cst_9 [1] : vector<32x8xf32> to vector<32xf32>
    %19 = vector.shape_cast %18 : vector<32xf32> to vector<32x1xf32>
    %cst_10 = arith.constant 8.000000e+00 : f32
    %20 = vector.broadcast %cst_10 : f32 to vector<32x1xf32>
    %21 = arith.divf %19, %20 : vector<32x1xf32>
    %22 = vector.broadcast %14 : vector<32x1xf32> to vector<32x8xf32>
    %23 = arith.subf %10, %22 : vector<32x8xf32>
    %cst_11 = arith.constant 9.99999974E-6 : f32
    %24 = vector.broadcast %cst_11 : f32 to vector<32x1xf32>
    %25 = arith.addf %21, %24 : vector<32x1xf32>
    %26 = math.rsqrt %25 : vector<32x1xf32>
    %27 = vector.broadcast %26 : vector<32x1xf32> to vector<32x8xf32>
    %28 = arith.mulf %23, %27 : vector<32x8xf32>
    %c0_12 = arith.constant 0 : index
    %c0_13 = arith.constant 0 : index
    %29 = vector.load %arg4[%c0_12, %c0_13] : memref<1x8xf32, #tpu.memory_space<vmem>>, vector<1x8xf32>
    %30 = vector.broadcast %29 : vector<1x8xf32> to vector<32x8xf32>
    %31 = arith.mulf %28, %30 : vector<32x8xf32>
    %c0_14 = arith.constant 0 : index
    %c0_15 = arith.constant 0 : index
    %32 = vector.load %arg5[%c0_14, %c0_15] : memref<1x8xf32, #tpu.memory_space<vmem>>, vector<1x8xf32>
    %33 = vector.broadcast %32 : vector<1x8xf32> to vector<32x8xf32>
    %34 = arith.addf %31, %33 : vector<32x8xf32>
    %c0_16 = arith.constant 0 : index
    %c0_17 = arith.constant 0 : index
    %35 = vector.load %arg6[%c0_16, %c0_17] : memref<8x24xf32, #tpu.memory_space<vmem>>, vector<8x24xf32>
    %cst_18 = arith.constant dense<0.000000e+00> : vector<32x24xf32>
    %36 = tpu.matmul %34, %35, %cst_18 {dimension_numbers = #tpu.dot_dimension_numbers<[1], [0], [0], [1], [0, 0, 1, 1], [], []>} : vector<32x8xf32>, vector<8x24xf32>, vector<32x24xf32> -> vector<32x24xf32>
    %c0_19 = arith.constant 0 : index
    %c0_20 = arith.constant 0 : index
    %37 = vector.load %arg7[%c0_19, %c0_20] : memref<1x24xf32, #tpu.memory_space<vmem>>, vector<1x24xf32>
    %38 = vector.broadcast %37 : vector<1x24xf32> to vector<32x24xf32>
    %39 = arith.addf %36, %38 : vector<32x24xf32>
    %40 = vector.shape_cast %39 : vector<32x24xf32> to vector<2x16x24xf32>
    %41 = vector.extract_strided_slice %40 {offsets = [0, 0, 0], sizes = [2, 16, 8], strides = [1, 1, 1]} : vector<2x16x24xf32> to vector<2x16x8xf32>
    %42 = vector.extract_strided_slice %40 {offsets = [0, 0, 8], sizes = [2, 16, 8], strides = [1, 1, 1]} : vector<2x16x24xf32> to vector<2x16x8xf32>
    %43 = vector.extract_strided_slice %40 {offsets = [0, 0, 16], sizes = [2, 16, 8], strides = [1, 1, 1]} : vector<2x16x24xf32> to vector<2x16x8xf32>
    "tpu.trace_start"() <{level = 10 : i32, message = "bqd,bkd->bqk"}> : () -> ()
    %cst_21 = arith.constant dense<0.000000e+00> : vector<2x16x16xf32>
    %44 = tpu.matmul %41, %42, %cst_21 {dimension_numbers = #tpu.dot_dimension_numbers<[2], [2], [1], [1], [0, 0, 0, 1, 1, 1], [0], [0]>} : vector<2x16x8xf32>, vector<2x16x8xf32>, vector<2x16x16xf32> -> vector<2x16x16xf32>
    "tpu.trace_stop"() : () -> ()
    %cst_22 = arith.constant 0.353553385 : f32
    %45 = vector.broadcast %cst_22 : f32 to vector<2x16x16xf32>
    %46 = arith.mulf %44, %45 : vector<2x16x16xf32>
    %47 = tpu.iota {dimensions = array<i32: 0>} : vector<16x16xi32>
    %48 = tpu.iota {dimensions = array<i32: 1>} : vector<16x16xi32>
    %49 = arith.cmpi sge, %47, %48 : vector<16x16xi32>
    %50 = vector.shape_cast %49 : vector<16x16xi1> to vector<1x16x16xi1>
    %cst_23 = arith.constant -1.000000e+30 : f32
    %51 = vector.shape_cast %50 : vector<1x16x16xi1> to vector<1x16x16xi1>
    %52 = vector.broadcast %51 : vector<1x16x16xi1> to vector<2x16x16xi1>
    %53 = vector.broadcast %cst_23 : f32 to vector<2x16x16xf32>
    %54 = arith.select %52, %46, %53 : vector<2x16x16xi1>, vector<2x16x16xf32>
    %cst_24 = arith.constant dense<0xFF800000> : vector<2x16xf32>
    %55 = vector.multi_reduction <maximumf>, %54, %cst_24 [2] : vector<2x16x16xf32> to vector<2x16xf32>
    %56 = vector.shape_cast %55 : vector<2x16xf32> to vector<2x16x1xf32>
    %57 = vector.broadcast %56 : vector<2x16x1xf32> to vector<2x16x16xf32>
    %58 = arith.subf %54, %57 : vector<2x16x16xf32>
    %59 = math.exp %58 : vector<2x16x16xf32>
    %cst_25 = arith.constant dense<0.000000e+00> : vector<2x16xf32>
    %60 = vector.multi_reduction <add>, %59, %cst_25 [2] : vector<2x16x16xf32> to vector<2x16xf32>
    %61 = vector.shape_cast %60 : vector<2x16xf32> to vector<2x16x1xf32>
    %62 = tpu.reciprocal %61 {approx = true} : vector<2x16x1xf32> -> vector<2x16x1xf32>
    %63 = vector.broadcast %62 : vector<2x16x1xf32> to vector<2x16x16xf32>
    %64 = arith.mulf %59, %63 : vector<2x16x16xf32>
    %c0_26 = arith.constant 0 : index
    %c0_27 = arith.constant 0 : index
    %c0_28 = arith.constant 0 : index
    %c0_29 = arith.constant 0 : index
    %65 = vector.load %arg22[%c0_26, %c0_27, %c0_28, %c0_29] : memref<1x2x16x16xf32, #tpu.memory_space<vmem>>, vector<1x2x16x16xf32>
    %66 = vector.shape_cast %65 : vector<1x2x16x16xf32> to vector<2x16x16xf32>
    %67 = vector.shape_cast %64 : vector<2x16x16xf32> to vector<1x2x16x16xf32>
    tpu.vector_store %arg22[%c0_26, %c0_27, %c0_28, %c0_29], %67 {strides = array<i32>} : memref<1x2x16x16xf32, #tpu.memory_space<vmem>>, vector<1x2x16x16xf32>,
    %68 = tpu.iota {dimensions = array<i32: 1>} : vector<1x16x1xi32>
    %c1_i32 = arith.constant 1 : i32
    %69 = arith.subi %0, %c1_i32 : i32
    %70 = vector.broadcast %69 : i32 to vector<1x16x1xi32>
    %71 = arith.cmpi eq, %68, %70 : vector<1x16x1xi32>
    %72 = arith.extui %71 : vector<1x16x1xi1> to vector<1x16x1xi32>
    %73 = arith.sitofp %72 : vector<1x16x1xi32> to vector<1x16x1xf32>
    %74 = vector.shape_cast %10 : vector<32x8xf32> to vector<2x16x8xf32>
    %75 = vector.broadcast %73 : vector<1x16x1xf32> to vector<2x16x8xf32>
    %76 = arith.mulf %74, %75 : vector<2x16x8xf32>
    %cst_30 = arith.constant dense<0.000000e+00> : vector<2x8xf32>
    %77 = vector.multi_reduction <add>, %76, %cst_30 [1] : vector<2x16x8xf32> to vector<2x8xf32>
    %78 = vector.broadcast %73 : vector<1x16x1xf32> to vector<2x16x16xf32>
    %79 = arith.mulf %64, %78 : vector<2x16x16xf32>
    %cst_31 = arith.constant dense<0.000000e+00> : vector<2x16xf32>
    %80 = vector.multi_reduction <add>, %79, %cst_31 [1] : vector<2x16x16xf32> to vector<2x16xf32>
    %81 = vector.shape_cast %80 : vector<2x16xf32> to vector<2x1x16xf32>
    "tpu.trace_start"() <{level = 10 : i32, message = "bqk,bkd->bqd"}> : () -> ()
    %cst_32 = arith.constant dense<0.000000e+00> : vector<2x1x8xf32>
    %82 = tpu.matmul %81, %43, %cst_32 {dimension_numbers = #tpu.dot_dimension_numbers<[2], [1], [1], [2], [0, 0, 0, 1, 1, 2], [0], [0]>} : vector<2x1x16xf32>, vector<2x16x8xf32>, vector<2x1x8xf32> -> vector<2x1x8xf32>
    "tpu.trace_stop"() : () -> ()
    %83 = vector.shape_cast %82 : vector<2x1x8xf32> to vector<2x8xf32>
    %c0_33 = arith.constant 0 : index
    %c0_34 = arith.constant 0 : index
    %84 = vector.load %arg8[%c0_33, %c0_34] : memref<8x8xf32, #tpu.memory_space<vmem>>, vector<8x8xf32>
    %cst_35 = arith.constant dense<0.000000e+00> : vector<2x8xf32>
    %85 = tpu.matmul %83, %84, %cst_35 {dimension_numbers = #tpu.dot_dimension_numbers<[1], [0], [0], [1], [0, 0, 1, 1], [], []>} : vector<2x8xf32>, vector<8x8xf32>, vector<2x8xf32> -> vector<2x8xf32>
    %c0_36 = arith.constant 0 : index
    %c0_37 = arith.constant 0 : index
    %86 = vector.load %arg9[%c0_36, %c0_37] : memref<1x8xf32, #tpu.memory_space<vmem>>, vector<1x8xf32>
    %87 = vector.broadcast %86 : vector<1x8xf32> to vector<2x8xf32>
    %88 = arith.addf %85, %87 : vector<2x8xf32>
    %89 = arith.addf %77, %88 : vector<2x8xf32>
    %cst_38 = arith.constant dense<0.000000e+00> : vector<2xf32>
    %90 = vector.multi_reduction <add>, %89, %cst_38 [1] : vector<2x8xf32> to vector<2xf32>
    %91 = vector.shape_cast %90 : vector<2xf32> to vector<2x1xf32>
    %cst_39 = arith.constant 8.000000e+00 : f32
    %92 = vector.broadcast %cst_39 : f32 to vector<2x1xf32>
    %93 = arith.divf %91, %92 : vector<2x1xf32>
    %94 = vector.broadcast %93 : vector<2x1xf32> to vector<2x8xf32>
    %95 = arith.subf %89, %94 : vector<2x8xf32>
    %96 = arith.mulf %95, %95 : vector<2x8xf32>
    %cst_40 = arith.constant dense<0.000000e+00> : vector<2xf32>
    %97 = vector.multi_reduction <add>, %96, %cst_40 [1] : vector<2x8xf32> to vector<2xf32>
    %98 = vector.shape_cast %97 : vector<2xf32> to vector<2x1xf32>
    %cst_41 = arith.constant 8.000000e+00 : f32
    %99 = vector.broadcast %cst_41 : f32 to vector<2x1xf32>
    %100 = arith.divf %98, %99 : vector<2x1xf32>
    %101 = vector.broadcast %93 : vector<2x1xf32> to vector<2x8xf32>
    %102 = arith.subf %89, %101 : vector<2x8xf32>
    %cst_42 = arith.constant 9.99999974E-6 : f32
    %103 = vector.broadcast %cst_42 : f32 to vector<2x1xf32>
    %104 = arith.addf %100, %103 : vector<2x1xf32>
    %105 = math.rsqrt %104 : vector<2x1xf32>
    %106 = vector.broadcast %105 : vector<2x1xf32> to vector<2x8xf32>
    %107 = arith.mulf %102, %106 : vector<2x8xf32>
    %c0_43 = arith.constant 0 : index
    %c0_44 = arith.constant 0 : index
    %108 = vector.load %arg10[%c0_43, %c0_44] : memref<1x8xf32, #tpu.memory_space<vmem>>, vector<1x8xf32>
    %109 = vector.broadcast %108 : vector<1x8xf32> to vector<2x8xf32>
    %110 = arith.mulf %107, %109 : vector<2x8xf32>
    %c0_45 = arith.constant 0 : index
    %c0_46 = arith.constant 0 : index
    %111 = vector.load %arg11[%c0_45, %c0_46] : memref<1x8xf32, #tpu.memory_space<vmem>>, vector<1x8xf32>
    %112 = vector.broadcast %111 : vector<1x8xf32> to vector<2x8xf32>
    %113 = arith.addf %110, %112 : vector<2x8xf32>
    %c0_47 = arith.constant 0 : index
    %c0_48 = arith.constant 0 : index
    %114 = vector.load %arg12[%c0_47, %c0_48] : memref<8x32xf32, #tpu.memory_space<vmem>>, vector<8x32xf32>
    %cst_49 = arith.constant dense<0.000000e+00> : vector<2x32xf32>
    %115 = tpu.matmul %113, %114, %cst_49 {dimension_numbers = #tpu.dot_dimension_numbers<[1], [0], [0], [1], [0, 0, 1, 1], [], []>} : vector<2x8xf32>, vector<8x32xf32>, vector<2x32xf32> -> vector<2x32xf32>
    %c0_50 = arith.constant 0 : index
    %c0_51 = arith.constant 0 : index
    %116 = vector.load %arg13[%c0_50, %c0_51] : memref<1x32xf32, #tpu.memory_space<vmem>>, vector<1x32xf32>
    %117 = vector.broadcast %116 : vector<1x32xf32> to vector<2x32xf32>
    %118 = arith.addf %115, %117 : vector<2x32xf32>
    %cst_52 = arith.constant 5.000000e-01 : f32
    %119 = vector.broadcast %cst_52 : f32 to vector<2x32xf32>
    %120 = arith.mulf %119, %118 : vector<2x32xf32>
    %cst_53 = arith.constant 4.471500e-02 : f32
    %121 = vector.broadcast %cst_53 : f32 to vector<2x32xf32>
    %122 = arith.mulf %121, %118 : vector<2x32xf32>
    %123 = arith.mulf %122, %118 : vector<2x32xf32>
    %124 = arith.mulf %123, %118 : vector<2x32xf32>
    %125 = arith.addf %118, %124 : vector<2x32xf32>
    %cst_54 = arith.constant 0.797884583 : f32
    %126 = vector.broadcast %cst_54 : f32 to vector<2x32xf32>
    %127 = arith.mulf %126, %125 : vector<2x32xf32>
    %128 = math.tanh %127 : vector<2x32xf32>
    %cst_55 = arith.constant 1.000000e+00 : f32
    %129 = vector.broadcast %cst_55 : f32 to vector<2x32xf32>
    %130 = arith.addf %129, %128 : vector<2x32xf32>
    %131 = arith.mulf %120, %130 : vector<2x32xf32>
    %c0_56 = arith.constant 0 : index
    %c0_57 = arith.constant 0 : index
    %132 = vector.load %arg14[%c0_56, %c0_57] : memref<32x8xf32, #tpu.memory_space<vmem>>, vector<32x8xf32>
    %cst_58 = arith.constant dense<0.000000e+00> : vector<2x8xf32>
    %133 = tpu.matmul %131, %132, %cst_58 {dimension_numbers = #tpu.dot_dimension_numbers<[1], [0], [0], [1], [0, 0, 1, 1], [], []>} : vector<2x32xf32>, vector<32x8xf32>, vector<2x8xf32> -> vector<2x8xf32>
    %c0_59 = arith.constant 0 : index
    %c0_60 = arith.constant 0 : index
    %134 = vector.load %arg15[%c0_59, %c0_60] : memref<1x8xf32, #tpu.memory_space<vmem>>, vector<1x8xf32>
    %135 = vector.broadcast %134 : vector<1x8xf32> to vector<2x8xf32>
    %136 = arith.addf %133, %135 : vector<2x8xf32>
    %137 = arith.addf %89, %136 : vector<2x8xf32>
    %cst_61 = arith.constant dense<0.000000e+00> : vector<2xf32>
    %138 = vector.multi_reduction <add>, %137, %cst_61 [1] : vector<2x8xf32> to vector<2xf32>
    %139 = vector.shape_cast %138 : vector<2xf32> to vector<2x1xf32>
    %cst_62 = arith.constant 8.000000e+00 : f32
    %140 = vector.broadcast %cst_62 : f32 to vector<2x1xf32>
    %141 = arith.divf %139, %140 : vector<2x1xf32>
    %142 = vector.broadcast %141 : vector<2x1xf32> to vector<2x8xf32>
    %143 = arith.subf %137, %142 : vector<2x8xf32>
    %144 = arith.mulf %143, %143 : vector<2x8xf32>
    %cst_63 = arith.constant dense<0.000000e+00> : vector<2xf32>
    %145 = vector.multi_reduction <add>, %144, %cst_63 [1] : vector<2x8xf32> to vector<2xf32>
    %146 = vector.shape_cast %145 : vector<2xf32> to vector<2x1xf32>
    %cst_64 = arith.constant 8.000000e+00 : f32
    %147 = vector.broadcast %cst_64 : f32 to vector<2x1xf32>
    %148 = arith.divf %146, %147 : vector<2x1xf32>
    %149 = vector.broadcast %141 : vector<2x1xf32> to vector<2x8xf32>
    %150 = arith.subf %137, %149 : vector<2x8xf32>
    %cst_65 = arith.constant 9.99999974E-6 : f32
    %151 = vector.broadcast %cst_65 : f32 to vector<2x1xf32>
    %152 = arith.addf %148, %151 : vector<2x1xf32>
    %153 = math.rsqrt %152 : vector<2x1xf32>
    %154 = vector.broadcast %153 : vector<2x1xf32> to vector<2x8xf32>
    %155 = arith.mulf %150, %154 : vector<2x8xf32>
    %c0_66 = arith.constant 0 : index
    %c0_67 = arith.constant 0 : index
    %156 = vector.load %arg16[%c0_66, %c0_67] : memref<1x8xf32, #tpu.memory_space<vmem>>, vector<1x8xf32>
    %157 = vector.broadcast %156 : vector<1x8xf32> to vector<2x8xf32>
    %158 = arith.mulf %155, %157 : vector<2x8xf32>
    %c0_68 = arith.constant 0 : index
    %c0_69 = arith.constant 0 : index
    %159 = vector.load %arg17[%c0_68, %c0_69] : memref<1x8xf32, #tpu.memory_space<vmem>>, vector<1x8xf32>
    %160 = vector.broadcast %159 : vector<1x8xf32> to vector<2x8xf32>
    %161 = arith.addf %158, %160 : vector<2x8xf32>
    %c0_70 = arith.constant 0 : index
    %c0_71 = arith.constant 0 : index
    %162 = vector.load %arg18[%c0_70, %c0_71] : memref<8x128xf32, #tpu.memory_space<vmem>>, vector<8x128xf32>
    %cst_72 = arith.constant dense<0.000000e+00> : vector<2x128xf32>
    %163 = tpu.matmul %161, %162, %cst_72 {dimension_numbers = #tpu.dot_dimension_numbers<[1], [0], [0], [1], [0, 0, 1, 1], [], []>} : vector<2x8xf32>, vector<8x128xf32>, vector<2x128xf32> -> vector<2x128xf32>
    %c0_73 = arith.constant 0 : index
    %c0_74 = arith.constant 0 : index
    %164 = vector.load %arg19[%c0_73, %c0_74] : memref<1x128xf32, #tpu.memory_space<vmem>>, vector<1x128xf32>
    %165 = vector.broadcast %164 : vector<1x128xf32> to vector<2x128xf32>
    %166 = arith.addf %163, %165 : vector<2x128xf32>
    %c0_75 = arith.constant 0 : index
    %c0_76 = arith.constant 0 : index
    %c0_77 = arith.constant 0 : index
    %167 = vector.load %arg21[%c0_75, %c0_76, %c0_77] : memref<1x2x128xf32, #tpu.memory_space<vmem>>, vector<1x2x128xf32>
    %168 = vector.shape_cast %167 : vector<1x2x128xf32> to vector<2x128xf32>
    %169 = vector.shape_cast %166 : vector<2x128xf32> to vector<1x2x128xf32>
    tpu.vector_store %arg21[%c0_75, %c0_76, %c0_77], %169 {strides = array<i32>} : memref<1x2x128xf32, #tpu.memory_space<vmem>>, vector<1x2x128xf32>,
    %cst_78 = arith.constant 0.000000e+00 : f32
    %170 = vector.broadcast %cst_78 : f32 to vector<2x128xf32>
    %171 = arith.cmpf ogt, %166, %170 : vector<2x128xf32>
    %172 = arith.extui %171 : vector<2x128xi1> to vector<2x128xi32>
    %173 = arith.sitofp %172 : vector<2x128xi32> to vector<2x128xf32>
    %c0_79 = arith.constant 0 : index
    %c0_80 = arith.constant 0 : index
    %174 = vector.load %arg20[%c0_79, %c0_80] : memref<128x8xf32, #tpu.memory_space<vmem>>, vector<128x8xf32>
    %cst_81 = arith.constant dense<0.000000e+00> : vector<2x8xf32>
    %175 = tpu.matmul %173, %174, %cst_81 {dimension_numbers = #tpu.dot_dimension_numbers<[1], [0], [0], [1], [0, 0, 1, 1], [], []>} : vector<2x128xf32>, vector<128x8xf32>, vector<2x8xf32> -> vector<2x8xf32>
    %176 = tpu.iota {dimensions = array<i32: 1>} : vector<2x16x8xi32>
    %177 = vector.broadcast %0 : i32 to vector<2x16x8xi32>
    %178 = arith.cmpi eq, %176, %177 : vector<2x16x8xi32>
    %179 = vector.shape_cast %175 : vector<2x8xf32> to vector<2x1x8xf32>
    %c0_82 = arith.constant 0 : index
    %c0_83 = arith.constant 0 : index
    %c0_84 = arith.constant 0 : index
    %180 = vector.load %arg23[%c0_82, %c0_83, %c0_84] : memref<2x16x8xf32, #tpu.memory_space<vmem>>, vector<2x16x8xf32>
    %181 = vector.shape_cast %179 : vector<2x1x8xf32> to vector<2x1x8xf32>
    %182 = vector.broadcast %181 : vector<2x1x8xf32> to vector<2x16x8xf32>
    %183 = arith.select %178, %182, %180 : vector<2x16x8xi1>, vector<2x16x8xf32>
    %c0_85 = arith.constant 0 : index
    %c0_86 = arith.constant 0 : index
    %c0_87 = arith.constant 0 : index
    %184 = vector.load %arg23[%c0_85, %c0_86, %c0_87] : memref<2x16x8xf32, #tpu.memory_space<vmem>>, vector<2x16x8xf32>
    tpu.vector_store %arg23[%c0_85, %c0_86, %c0_87], %183 {strides = array<i32>} : memref<2x16x8xf32, #tpu.memory_space<vmem>>, vector<2x16x8xf32>,
    return
  }
  func.func @transform_0(%arg0: i32) -> (i32, i32, i32) {
    %c0_i32 = arith.constant 0 : i32
    %c0_i32_0 = arith.constant 0 : i32
    %c0_i32_1 = arith.constant 0 : i32
    %c0_i32_2 = arith.constant 0 : i32
    return %c0_i32, %c0_i32_0, %c0_i32_1 : i32, i32, i32
  }
  func.func @transform_1(%arg0: i32) -> (i32, i32) {
    %c0_i32 = arith.constant 0 : i32
    %c0_i32_0 = arith.constant 0 : i32
    %c0_i32_1 = arith.constant 0 : i32
    return %c0_i32, %c0_i32_0 : i32, i32
  }
  func.func @transform_2(%arg0: i32) -> (i32, i32) {
    %c0_i32 = arith.constant 0 : i32
    %c0_i32_0 = arith.constant 0 : i32
    %c0_i32_1 = arith.constant 0 : i32
    return %c0_i32, %c0_i32_0 : i32, i32
  }
  func.func @transform_3(%arg0: i32) -> (i32, i32) {
    %c0_i32 = arith.constant 0 : i32
    %c0_i32_0 = arith.constant 0 : i32
    %c0_i32_1 = arith.constant 0 : i32
    return %c0_i32, %c0_i32_0 : i32, i32
  }
  func.func @transform_4(%arg0: i32) -> (i32, i32) {
    %c0_i32 = arith.constant 0 : i32
    %c0_i32_0 = arith.constant 0 : i32
    %c0_i32_1 = arith.constant 0 : i32
    return %c0_i32, %c0_i32_0 : i32, i32
  }
  func.func @transform_5(%arg0: i32) -> (i32, i32) {
    %c0_i32 = arith.constant 0 : i32
    %c0_i32_0 = arith.constant 0 : i32
    %c0_i32_1 = arith.constant 0 : i32
    return %c0_i32, %c0_i32_0 : i32, i32
  }
  func.func @transform_6(%arg0: i32) -> (i32, i32) {
    %c0_i32 = arith.constant 0 : i32
    %c0_i32_0 = arith.constant 0 : i32
    %c0_i32_1 = arith.constant 0 : i32
    return %c0_i32, %c0_i32_0 : i32, i32
  }
  func.func @transform_7(%arg0: i32) -> (i32, i32) {
    %c0_i32 = arith.constant 0 : i32
    %c0_i32_0 = arith.constant 0 : i32
    %c0_i32_1 = arith.constant 0 : i32
    return %c0_i32, %c0_i32_0 : i32, i32
  }
  func.func @transform_8(%arg0: i32) -> (i32, i32) {
    %c0_i32 = arith.constant 0 : i32
    %c0_i32_0 = arith.constant 0 : i32
    %c0_i32_1 = arith.constant 0 : i32
    return %c0_i32, %c0_i32_0 : i32, i32
  }
  func.func @transform_9(%arg0: i32) -> (i32, i32) {
    %c0_i32 = arith.constant 0 : i32
    %c0_i32_0 = arith.constant 0 : i32
    %c0_i32_1 = arith.constant 0 : i32
    return %c0_i32, %c0_i32_0 : i32, i32
  }
  func.func @transform_10(%arg0: i32) -> (i32, i32) {
    %c0_i32 = arith.constant 0 : i32
    %c0_i32_0 = arith.constant 0 : i32
    %c0_i32_1 = arith.constant 0 : i32
    return %c0_i32, %c0_i32_0 : i32, i32
  }
  func.func @transform_11(%arg0: i32) -> (i32, i32) {
    %c0_i32 = arith.constant 0 : i32
    %c0_i32_0 = arith.constant 0 : i32
    %c0_i32_1 = arith.constant 0 : i32
    return %c0_i32, %c0_i32_0 : i32, i32
  }
  func.func @transform_12(%arg0: i32) -> (i32, i32) {
    %c0_i32 = arith.constant 0 : i32
    %c0_i32_0 = arith.constant 0 : i32
    %c0_i32_1 = arith.constant 0 : i32
    return %c0_i32, %c0_i32_0 : i32, i32
  }
  func.func @transform_13(%arg0: i32) -> (i32, i32) {
    %c0_i32 = arith.constant 0 : i32
    %c0_i32_0 = arith.constant 0 : i32
    %c0_i32_1 = arith.constant 0 : i32
    return %c0_i32, %c0_i32_0 : i32, i32
  }
  func.func @transform_14(%arg0: i32) -> (i32, i32) {
    %c0_i32 = arith.constant 0 : i32
    %c0_i32_0 = arith.constant 0 : i32
    %c0_i32_1 = arith.constant 0 : i32
    return %c0_i32, %c0_i32_0 : i32, i32
  }
  func.func @transform_15(%arg0: i32) -> (i32, i32) {
    %c0_i32 = arith.constant 0 : i32
    %c0_i32_0 = arith.constant 0 : i32
    %c0_i32_1 = arith.constant 0 : i32
    return %c0_i32, %c0_i32_0 : i32, i32
  }
  func.func @transform_16(%arg0: i32) -> (i32, i32) {
    %c0_i32 = arith.constant 0 : i32
    %c0_i32_0 = arith.constant 0 : i32
    %c0_i32_1 = arith.constant 0 : i32
    return %c0_i32, %c0_i32_0 : i32, i32
  }
  func.func @transform_17(%arg0: i32) -> (i32, i32) {
    %c0_i32 = arith.constant 0 : i32
    %c0_i32_0 = arith.constant 0 : i32
    %c0_i32_1 = arith.constant 0 : i32
    return %c0_i32, %c0_i32_0 : i32, i32
  }
  func.func @transform_18(%arg0: i32) -> (i32, i32) {
    %c0_i32 = arith.constant 0 : i32
    %c0_i32_0 = arith.constant 0 : i32
    %c0_i32_1 = arith.constant 0 : i32
    return %c0_i32, %c0_i32_0 : i32, i32
  }
  func.func @transform_19(%arg0: i32) -> (i32, i32) {
    %c0_i32 = arith.constant 0 : i32
    %c0_i32_0 = arith.constant 0 : i32
    %c0_i32_1 = arith.constant 0 : i32
    return %c0_i32, %c0_i32_0 : i32, i32
  }
  func.func @transform_20(%arg0: i32) -> (i32, i32, i32) {
    %c0_i32 = arith.constant 0 : i32
    %c0_i32_0 = arith.constant 0 : i32
    %c0_i32_1 = arith.constant 0 : i32
    return %arg0, %c0_i32, %c0_i32_0 : i32, i32, i32
  }
  func.func @transform_21(%arg0: i32) -> (i32, i32, i32, i32) {
    %c0_i32 = arith.constant 0 : i32
    %c0_i32_0 = arith.constant 0 : i32
    %c0_i32_1 = arith.constant 0 : i32
    %c0_i32_2 = arith.constant 0 : i32
    return %arg0, %c0_i32, %c0_i32_0, %c0_i32_1 : i32, i32, i32, i32
  }
}

</mosaic_0001>

<llo_original>
// kernel: _gpt2_autoreg.1
$region0: #{_gpt2_autoreg.1}
  #allocation0 [shape = 'u32[]', space=smem, size = 0x4, offset = 0x4, fixed_abs, tag = 'smem constant byte address 0x4 - core index']
  #allocation1 [shape = 'u32[144,128]{1,0:T(1,128)}', space=vmem, size = 0x12000, scoped, tag = 'internal scratch']
  #allocation2 [shape = 'f32[2,16,8]{2,1,0:T(8,128)}', space=vmem, size = 0x4000, scoped, tag = 'scratch operand']
  %s0 = inlined_call_operand.vmem [shape: f32[2,16,8], index: 0, kind: input, shape index: {}]
  %s1 = inlined_call_operand.vmem [shape: f32[8,8], index: 1, kind: input, shape index: {}]
  %s2 = inlined_call_operand.vmem [shape: f32[1,8], index: 2, kind: input, shape index: {}]
  %s3 = inlined_call_operand.vmem [shape: f32[1,8], index: 3, kind: input, shape index: {}]
  %s4 = inlined_call_operand.vmem [shape: f32[1,8], index: 4, kind: input, shape index: {}]
  %s5 = inlined_call_operand.vmem [shape: f32[8,24], index: 5, kind: input, shape index: {}]
  %s6 = inlined_call_operand.vmem [shape: f32[1,24], index: 6, kind: input, shape index: {}]
  %s7 = inlined_call_operand.vmem [shape: f32[8,8], index: 7, kind: input, shape index: {}]
  %s8 = inlined_call_operand.vmem [shape: f32[1,8], index: 8, kind: input, shape index: {}]
  %s9 = inlined_call_operand.vmem [shape: f32[1,8], index: 9, kind: input, shape index: {}]
  %s10 = inlined_call_operand.vmem [shape: f32[1,8], index: 10, kind: input, shape index: {}]
  %s11 = inlined_call_operand.vmem [shape: f32[8,32], index: 11, kind: input, shape index: {}]
  %s12 = inlined_call_operand.vmem [shape: f32[1,32], index: 12, kind: input, shape index: {}]
  %s13 = inlined_call_operand.vmem [shape: f32[32,8], index: 13, kind: input, shape index: {}]
  %s14 = inlined_call_operand.vmem [shape: f32[1,8], index: 14, kind: input, shape index: {}]
  %s15 = inlined_call_operand.vmem [shape: f32[1,8], index: 15, kind: input, shape index: {}]
  %s16 = inlined_call_operand.vmem [shape: f32[1,8], index: 16, kind: input, shape index: {}]
  %s17 = inlined_call_operand.vmem [shape: f32[8,128], index: 17, kind: input, shape index: {}]
  %s18 = inlined_call_operand.vmem [shape: f32[1,128], index: 18, kind: input, shape index: {}]
  %s19 = inlined_call_operand.vmem [shape: f32[128,8], index: 19, kind: input, shape index: {}]
  %s20 = inlined_call_operand.hbm [shape: f32[3,2,128], index: 20, kind: output, shape index: {0}]
  %s21 = inlined_call_operand.hbm [shape: f32[3,2,16,16], index: 21, kind: output, shape index: {1}]
  %22 = xla_tuple %s20, %s21
  %s23 = sld [smem:[#allocation0]]
  $region125: #{_gpt2_autoreg.1} parent=0
    _
  %s25 = ssub.s32 1, %s23
  %s26 = scalar_select 0, %s25, %s23
  $region1: #{_gpt2_autoreg.1} parent=0
    #allocation3 [shape = 'u8[2048]{0}', space=vmem, size = 0x800, scoped, tag = 'output window, operand 0']
    #allocation4 [shape = 's32[2]{0}', space=sflag, size = 0x8, scoped, tag = 'scoped memory for _gpt2_autoreg.1']
    #allocation5 [shape = 'u8[32768]{0}', space=vmem, size = 0x8000, scoped, tag = 'output window, operand 1']
    #allocation6 [shape = 's32[2]{0}', space=sflag, size = 0x8, scoped, tag = 'scoped memory for _gpt2_autoreg.1']
    %27 = vsyncpa [#allocation4], 0
    %s28 = scalar_lea.sflag [#allocation4], 1
    %29 = vsyncpa %s28, 0
    %30 = vsyncpa [#allocation6], 0
    %s31 = scalar_lea.sflag [#allocation6], 1
    %32 = vsyncpa %s31, 0
    loop: start=0, step=1, limit=5
    $region2: #{_gpt2_autoreg.1} parent=1 // loop_pre_header
      _
    $region3: #{_gpt2_autoreg.1} parent=1 // loop_header
      %s34 = sphi 0, %s38
      %p35 = scmp.ge.s32.totalorder %s34, 5
      %s42 = sphi 0, %s42
      %s44 = sphi 0, %s42
      %s45 = sphi 0, %s44
      %s59 = sphi 0, %s45
      %s63 = sphi 0, %s63
      %s65 = sphi 0, %s63
      %s66 = sphi 0, %s65
      %s80 = sphi 0, %s66
      %s84 = sphi 0, %s84
      %s86 = sphi 0, %s84
      %s87 = sphi 0, %s86
      %s101 = sphi 0, %s87
      %s105 = sphi 0, %s105
      %s107 = sphi 0, %s105
      %s108 = sphi 0, %s107
      %s122 = sphi 0, %s108
      %s126 = sphi 0, %s126
      %s128 = sphi 0, %s126
      %s129 = sphi 0, %s128
      %s143 = sphi 0, %s129
      %s147 = sphi 0, %s147
      %s149 = sphi 0, %s147
      %s150 = sphi 0, %s149
      %s164 = sphi 0, %s150
      %s168 = sphi 0, %s168
      %s170 = sphi 0, %s168
      %s171 = sphi 0, %s170
      %s185 = sphi 0, %s171
      %s189 = sphi 0, %s189
      %s191 = sphi 0, %s189
      %s192 = sphi 0, %s191
      %s206 = sphi 0, %s192
      %s210 = sphi 0, %s210
      %s212 = sphi 0, %s210
      %s213 = sphi 0, %s212
      %s227 = sphi 0, %s213
      %s231 = sphi 0, %s231
      %s233 = sphi 0, %s231
      %s234 = sphi 0, %s233
      %s248 = sphi 0, %s234
      %s252 = sphi 0, %s252
      %s254 = sphi 0, %s252
      %s255 = sphi 0, %s254
      %s269 = sphi 0, %s255
      %s273 = sphi 0, %s273
      %s275 = sphi 0, %s273
      %s276 = sphi 0, %s275
      %s290 = sphi 0, %s276
      %s294 = sphi 0, %s294
      %s296 = sphi 0, %s294
      %s297 = sphi 0, %s296
      %s311 = sphi 0, %s297
      %s315 = sphi 0, %s315
      %s317 = sphi 0, %s315
      %s318 = sphi 0, %s317
      %s332 = sphi 0, %s318
      %s336 = sphi 0, %s336
      %s338 = sphi 0, %s336
      %s339 = sphi 0, %s338
      %s353 = sphi 0, %s339
      %s357 = sphi 0, %s357
      %s359 = sphi 0, %s357
      %s360 = sphi 0, %s359
      %s374 = sphi 0, %s360
      %s378 = sphi 0, %s378
      %s380 = sphi 0, %s378
      %s381 = sphi 0, %s380
      %s395 = sphi 0, %s381
      %s399 = sphi 0, %s399
      %s401 = sphi 0, %s399
      %s402 = sphi 0, %s401
      %s416 = sphi 0, %s402
      %s420 = sphi 0, %s420
      %s422 = sphi 0, %s420
      %s423 = sphi 0, %s422
      %s437 = sphi 0, %s423
      %s441 = sphi 0, %s441
      %s443 = sphi 0, %s441
      %s444 = sphi 0, %s443
      %s458 = sphi 0, %s444
      %s464 = sphi 0, %s466
      %s467 = sphi 0, %s464
      %s468 = sphi 0, %s467
      %s484 = sphi 0, %s468
      %s490 = sphi 0, %s492
      %s493 = sphi 0, %s490
      %s494 = sphi 0, %s493
      %s510 = sphi 0, %s494
    $region4: #{_gpt2_autoreg.1} parent=1 // loop_header_branch
      %37 = sbr.rel (%p35) target = $region8
    $region5: #{_gpt2_autoreg.1} parent=1 // loop_body
      %s39 = ssub.s32 %s34, 1
      %s40 = ssub.s32 %s34, 2
      %s41 = sadd.s32 %s34, 1
      %s43 = sadd.s32 %s42, 1
      %p46 = scmp.eq.s32.totalorder %s34, 2
      %p47 = scmp.ne.s32.totalorder %s42, %s44
      %p48 = scmp.eq.s32.totalorder %s34, 0
      %p49 = por %p47, %p48
      %p50 = scmp.ne.s32.totalorder %s42, %s44
      %p51 = scmp.eq.s32.totalorder %s39, 2
      %p52 = por %p50, %p51
      %p53 = scmp.ne.s32.totalorder %s44, %s45
      %p54 = scmp.eq.s32.totalorder %s39, 0
      %p55 = por %p53, %p54
      %p56 = scmp.ne.s32.totalorder %s44, %s45
      %p57 = scmp.eq.s32.totalorder %s40, 2
      %p58 = por %p56, %p57
      %p60 = scmp.ne.s32.totalorder %s45, %s59
      %p61 = scmp.eq.s32.totalorder %s40, 0
      %p62 = por %p60, %p61
      %s64 = sadd.s32 %s63, 1
      %p67 = scmp.eq.s32.totalorder %s34, 2
      %p68 = scmp.ne.s32.totalorder %s63, %s65
      %p69 = scmp.eq.s32.totalorder %s34, 0
      %p70 = por %p68, %p69
      %p71 = scmp.ne.s32.totalorder %s63, %s65
      %p72 = scmp.eq.s32.totalorder %s39, 2
      %p73 = por %p71, %p72
      %p74 = scmp.ne.s32.totalorder %s65, %s66
      %p75 = scmp.eq.s32.totalorder %s39, 0
      %p76 = por %p74, %p75
      %p77 = scmp.ne.s32.totalorder %s65, %s66
      %p78 = scmp.eq.s32.totalorder %s40, 2
      %p79 = por %p77, %p78
      %p81 = scmp.ne.s32.totalorder %s66, %s80
      %p82 = scmp.eq.s32.totalorder %s40, 0
      %p83 = por %p81, %p82
      %s85 = sadd.s32 %s84, 1
      %p88 = scmp.eq.s32.totalorder %s34, 2
      %p89 = scmp.ne.s32.totalorder %s84, %s86
      %p90 = scmp.eq.s32.totalorder %s34, 0
      %p91 = por %p89, %p90
      %p92 = scmp.ne.s32.totalorder %s84, %s86
      %p93 = scmp.eq.s32.totalorder %s39, 2
      %p94 = por %p92, %p93
      %p95 = scmp.ne.s32.totalorder %s86, %s87
      %p96 = scmp.eq.s32.totalorder %s39, 0
      %p97 = por %p95, %p96
      %p98 = scmp.ne.s32.totalorder %s86, %s87
      %p99 = scmp.eq.s32.totalorder %s40, 2
      %p100 = por %p98, %p99
      %p102 = scmp.ne.s32.totalorder %s87, %s101
      %p103 = scmp.eq.s32.totalorder %s40, 0
      %p104 = por %p102, %p103
      %s106 = sadd.s32 %s105, 1
      %p109 = scmp.eq.s32.totalorder %s34, 2
      %p110 = scmp.ne.s32.totalorder %s105, %s107
      %p111 = scmp.eq.s32.totalorder %s34, 0
      %p112 = por %p110, %p111
      %p113 = scmp.ne.s32.totalorder %s105, %s107
      %p114 = scmp.eq.s32.totalorder %s39, 2
      %p115 = por %p113, %p114
      %p116 = scmp.ne.s32.totalorder %s107, %s108
      %p117 = scmp.eq.s32.totalorder %s39, 0
      %p118 = por %p116, %p117
      %p119 = scmp.ne.s32.totalorder %s107, %s108
      %p120 = scmp.eq.s32.totalorder %s40, 2
      %p121 = por %p119, %p120
      %p123 = scmp.ne.s32.totalorder %s108, %s122
      %p124 = scmp.eq.s32.totalorder %s40, 0
      %p125 = por %p123, %p124
      %s127 = sadd.s32 %s126, 1
      %p130 = scmp.eq.s32.totalorder %s34, 2
      %p131 = scmp.ne.s32.totalorder %s126, %s128
      %p132 = scmp.eq.s32.totalorder %s34, 0
      %p133 = por %p131, %p132
      %p134 = scmp.ne.s32.totalorder %s126, %s128
      %p135 = scmp.eq.s32.totalorder %s39, 2
      %p136 = por %p134, %p135
      %p137 = scmp.ne.s32.totalorder %s128, %s129
      %p138 = scmp.eq.s32.totalorder %s39, 0
      %p139 = por %p137, %p138
      %p140 = scmp.ne.s32.totalorder %s128, %s129
      %p141 = scmp.eq.s32.totalorder %s40, 2
      %p142 = por %p140, %p141
      %p144 = scmp.ne.s32.totalorder %s129, %s143
      %p145 = scmp.eq.s32.totalorder %s40, 0
      %p146 = por %p144, %p145
      %s148 = sadd.s32 %s147, 1
      %p151 = scmp.eq.s32.totalorder %s34, 2
      %p152 = scmp.ne.s32.totalorder %s147, %s149
      %p153 = scmp.eq.s32.totalorder %s34, 0
      %p154 = por %p152, %p153
      %p155 = scmp.ne.s32.totalorder %s147, %s149
      %p156 = scmp.eq.s32.totalorder %s39, 2
      %p157 = por %p155, %p156
      %p158 = scmp.ne.s32.totalorder %s149, %s150
      %p159 = scmp.eq.s32.totalorder %s39, 0
      %p160 = por %p158, %p159
      %p161 = scmp.ne.s32.totalorder %s149, %s150
      %p162 = scmp.eq.s32.totalorder %s40, 2
      %p163 = por %p161, %p162
      %p165 = scmp.ne.s32.totalorder %s150, %s164
      %p166 = scmp.eq.s32.totalorder %s40, 0
      %p167 = por %p165, %p166
      %s169 = sadd.s32 %s168, 1
      %p172 = scmp.eq.s32.totalorder %s34, 2
      %p173 = scmp.ne.s32.totalorder %s168, %s170
      %p174 = scmp.eq.s32.totalorder %s34, 0
      %p175 = por %p173, %p174
      %p176 = scmp.ne.s32.totalorder %s168, %s170
      %p177 = scmp.eq.s32.totalorder %s39, 2
      %p178 = por %p176, %p177
      %p179 = scmp.ne.s32.totalorder %s170, %s171
      %p180 = scmp.eq.s32.totalorder %s39, 0
      %p181 = por %p179, %p180
      %p182 = scmp.ne.s32.totalorder %s170, %s171
      %p183 = scmp.eq.s32.totalorder %s40, 2
      %p184 = por %p182, %p183
      %p186 = scmp.ne.s32.totalorder %s171, %s185
      %p187 = scmp.eq.s32.totalorder %s40, 0
      %p188 = por %p186, %p187
      %s190 = sadd.s32 %s189, 1
      %p193 = scmp.eq.s32.totalorder %s34, 2
      %p194 = scmp.ne.s32.totalorder %s189, %s191
      %p195 = scmp.eq.s32.totalorder %s34, 0
      %p196 = por %p194, %p195
      %p197 = scmp.ne.s32.totalorder %s189, %s191
      %p198 = scmp.eq.s32.totalorder %s39, 2
      %p199 = por %p197, %p198
      %p200 = scmp.ne.s32.totalorder %s191, %s192
      %p201 = scmp.eq.s32.totalorder %s39, 0
      %p202 = por %p200, %p201
      %p203 = scmp.ne.s32.totalorder %s191, %s192
      %p204 = scmp.eq.s32.totalorder %s40, 2
      %p205 = por %p203, %p204
      %p207 = scmp.ne.s32.totalorder %s192, %s206
      %p208 = scmp.eq.s32.totalorder %s40, 0
      %p209 = por %p207, %p208
      %s211 = sadd.s32 %s210, 1
      %p214 = scmp.eq.s32.totalorder %s34, 2
      %p215 = scmp.ne.s32.totalorder %s210, %s212
      %p216 = scmp.eq.s32.totalorder %s34, 0
      %p217 = por %p215, %p216
      %p218 = scmp.ne.s32.totalorder %s210, %s212
      %p219 = scmp.eq.s32.totalorder %s39, 2
      %p220 = por %p218, %p219
      %p221 = scmp.ne.s32.totalorder %s212, %s213
      %p222 = scmp.eq.s32.totalorder %s39, 0
      %p223 = por %p221, %p222
      %p224 = scmp.ne.s32.totalorder %s212, %s213
      %p225 = scmp.eq.s32.totalorder %s40, 2
      %p226 = por %p224, %p225
      %p228 = scmp.ne.s32.totalorder %s213, %s227
      %p229 = scmp.eq.s32.totalorder %s40, 0
      %p230 = por %p228, %p229
      %s232 = sadd.s32 %s231, 1
      %p235 = scmp.eq.s32.totalorder %s34, 2
      %p236 = scmp.ne.s32.totalorder %s231, %s233
      %p237 = scmp.eq.s32.totalorder %s34, 0
      %p238 = por %p236, %p237
      %p239 = scmp.ne.s32.totalorder %s231, %s233
      %p240 = scmp.eq.s32.totalorder %s39, 2
      %p241 = por %p239, %p240
      %p242 = scmp.ne.s32.totalorder %s233, %s234
      %p243 = scmp.eq.s32.totalorder %s39, 0
      %p244 = por %p242, %p243
      %p245 = scmp.ne.s32.totalorder %s233, %s234
      %p246 = scmp.eq.s32.totalorder %s40, 2
      %p247 = por %p245, %p246
      %p249 = scmp.ne.s32.totalorder %s234, %s248
      %p250 = scmp.eq.s32.totalorder %s40, 0
      %p251 = por %p249, %p250
      %s253 = sadd.s32 %s252, 1
      %p256 = scmp.eq.s32.totalorder %s34, 2
      %p257 = scmp.ne.s32.totalorder %s252, %s254
      %p258 = scmp.eq.s32.totalorder %s34, 0
      %p259 = por %p257, %p258
      %p260 = scmp.ne.s32.totalorder %s252, %s254
      %p261 = scmp.eq.s32.totalorder %s39, 2
      %p262 = por %p260, %p261
      %p263 = scmp.ne.s32.totalorder %s254, %s255
      %p264 = scmp.eq.s32.totalorder %s39, 0
      %p265 = por %p263, %p264
      %p266 = scmp.ne.s32.totalorder %s254, %s255
      %p267 = scmp.eq.s32.totalorder %s40, 2
      %p268 = por %p266, %p267
      %p270 = scmp.ne.s32.totalorder %s255, %s269
      %p271 = scmp.eq.s32.totalorder %s40, 0
      %p272 = por %p270, %p271
      %s274 = sadd.s32 %s273, 1
      %p277 = scmp.eq.s32.totalorder %s34, 2
      %p278 = scmp.ne.s32.totalorder %s273, %s275
      %p279 = scmp.eq.s32.totalorder %s34, 0
      %p280 = por %p278, %p279
      %p281 = scmp.ne.s32.totalorder %s273, %s275
      %p282 = scmp.eq.s32.totalorder %s39, 2
      %p283 = por %p281, %p282
      %p284 = scmp.ne.s32.totalorder %s275, %s276
      %p285 = scmp.eq.s32.totalorder %s39, 0
      %p286 = por %p284, %p285
      %p287 = scmp.ne.s32.totalorder %s275, %s276
      %p288 = scmp.eq.s32.totalorder %s40, 2
      %p289 = por %p287, %p288
      %p291 = scmp.ne.s32.totalorder %s276, %s290
      %p292 = scmp.eq.s32.totalorder %s40, 0
      %p293 = por %p291, %p292
      %s295 = sadd.s32 %s294, 1
      %p298 = scmp.eq.s32.totalorder %s34, 2
      %p299 = scmp.ne.s32.totalorder %s294, %s296
      %p300 = scmp.eq.s32.totalorder %s34, 0
      %p301 = por %p299, %p300
      %p302 = scmp.ne.s32.totalorder %s294, %s296
      %p303 = scmp.eq.s32.totalorder %s39, 2
      %p304 = por %p302, %p303
      %p305 = scmp.ne.s32.totalorder %s296, %s297
      %p306 = scmp.eq.s32.totalorder %s39, 0
      %p307 = por %p305, %p306
      %p308 = scmp.ne.s32.totalorder %s296, %s297
      %p309 = scmp.eq.s32.totalorder %s40, 2
      %p310 = por %p308, %p309
      %p312 = scmp.ne.s32.totalorder %s297, %s311
      %p313 = scmp.eq.s32.totalorder %s40, 0
      %p314 = por %p312, %p313
      %s316 = sadd.s32 %s315, 1
      %p319 = scmp.eq.s32.totalorder %s34, 2
      %p320 = scmp.ne.s32.totalorder %s315, %s317
      %p321 = scmp.eq.s32.totalorder %s34, 0
      %p322 = por %p320, %p321
      %p323 = scmp.ne.s32.totalorder %s315, %s317
      %p324 = scmp.eq.s32.totalorder %s39, 2
      %p325 = por %p323, %p324
      %p326 = scmp.ne.s32.totalorder %s317, %s318
      %p327 = scmp.eq.s32.totalorder %s39, 0
      %p328 = por %p326, %p327
      %p329 = scmp.ne.s32.totalorder %s317, %s318
      %p330 = scmp.eq.s32.totalorder %s40, 2
      %p331 = por %p329, %p330
      %p333 = scmp.ne.s32.totalorder %s318, %s332
      %p334 = scmp.eq.s32.totalorder %s40, 0
      %p335 = por %p333, %p334
      %s337 = sadd.s32 %s336, 1
      %p340 = scmp.eq.s32.totalorder %s34, 2
      %p341 = scmp.ne.s32.totalorder %s336, %s338
      %p342 = scmp.eq.s32.totalorder %s34, 0
      %p343 = por %p341, %p342
      %p344 = scmp.ne.s32.totalorder %s336, %s338
      %p345 = scmp.eq.s32.totalorder %s39, 2
      %p346 = por %p344, %p345
      %p347 = scmp.ne.s32.totalorder %s338, %s339
      %p348 = scmp.eq.s32.totalorder %s39, 0
      %p349 = por %p347, %p348
      %p350 = scmp.ne.s32.totalorder %s338, %s339
      %p351 = scmp.eq.s32.totalorder %s40, 2
      %p352 = por %p350, %p351
      %p354 = scmp.ne.s32.totalorder %s339, %s353
      %p355 = scmp.eq.s32.totalorder %s40, 0
      %p356 = por %p354, %p355
      %s358 = sadd.s32 %s357, 1
      %p361 = scmp.eq.s32.totalorder %s34, 2
      %p362 = scmp.ne.s32.totalorder %s357, %s359
      %p363 = scmp.eq.s32.totalorder %s34, 0
      %p364 = por %p362, %p363
      %p365 = scmp.ne.s32.totalorder %s357, %s359
      %p366 = scmp.eq.s32.totalorder %s39, 2
      %p367 = por %p365, %p366
      %p368 = scmp.ne.s32.totalorder %s359, %s360
      %p369 = scmp.eq.s32.totalorder %s39, 0
      %p370 = por %p368, %p369
      %p371 = scmp.ne.s32.totalorder %s359, %s360
      %p372 = scmp.eq.s32.totalorder %s40, 2
      %p373 = por %p371, %p372
      %p375 = scmp.ne.s32.totalorder %s360, %s374
      %p376 = scmp.eq.s32.totalorder %s40, 0
      %p377 = por %p375, %p376
      %s379 = sadd.s32 %s378, 1
      %p382 = scmp.eq.s32.totalorder %s34, 2
      %p383 = scmp.ne.s32.totalorder %s378, %s380
      %p384 = scmp.eq.s32.totalorder %s34, 0
      %p385 = por %p383, %p384
      %p386 = scmp.ne.s32.totalorder %s378, %s380
      %p387 = scmp.eq.s32.totalorder %s39, 2
      %p388 = por %p386, %p387
      %p389 = scmp.ne.s32.totalorder %s380, %s381
      %p390 = scmp.eq.s32.totalorder %s39, 0
      %p391 = por %p389, %p390
      %p392 = scmp.ne.s32.totalorder %s380, %s381
      %p393 = scmp.eq.s32.totalorder %s40, 2
      %p394 = por %p392, %p393
      %p396 = scmp.ne.s32.totalorder %s381, %s395
      %p397 = scmp.eq.s32.totalorder %s40, 0
      %p398 = por %p396, %p397
      %s400 = sadd.s32 %s399, 1
      %p403 = scmp.eq.s32.totalorder %s34, 2
      %p404 = scmp.ne.s32.totalorder %s399, %s401
      %p405 = scmp.eq.s32.totalorder %s34, 0
      %p406 = por %p404, %p405
      %p407 = scmp.ne.s32.totalorder %s399, %s401
      %p408 = scmp.eq.s32.totalorder %s39, 2
      %p409 = por %p407, %p408
      %p410 = scmp.ne.s32.totalorder %s401, %s402
      %p411 = scmp.eq.s32.totalorder %s39, 0
      %p412 = por %p410, %p411
      %p413 = scmp.ne.s32.totalorder %s401, %s402
      %p414 = scmp.eq.s32.totalorder %s40, 2
      %p415 = por %p413, %p414
      %p417 = scmp.ne.s32.totalorder %s402, %s416
      %p418 = scmp.eq.s32.totalorder %s40, 0
      %p419 = por %p417, %p418
      %s421 = sadd.s32 %s420, 1
      %p424 = scmp.eq.s32.totalorder %s34, 2
      %p425 = scmp.ne.s32.totalorder %s420, %s422
      %p426 = scmp.eq.s32.totalorder %s34, 0
      %p427 = por %p425, %p426
      %p428 = scmp.ne.s32.totalorder %s420, %s422
      %p429 = scmp.eq.s32.totalorder %s39, 2
      %p430 = por %p428, %p429
      %p431 = scmp.ne.s32.totalorder %s422, %s423
      %p432 = scmp.eq.s32.totalorder %s39, 0
      %p433 = por %p431, %p432
      %p434 = scmp.ne.s32.totalorder %s422, %s423
      %p435 = scmp.eq.s32.totalorder %s40, 2
      %p436 = por %p434, %p435
      %p438 = scmp.ne.s32.totalorder %s423, %s437
      %p439 = scmp.eq.s32.totalorder %s40, 0
      %p440 = por %p438, %p439
      %s442 = sadd.s32 %s441, 1
      %p445 = scmp.eq.s32.totalorder %s34, 2
      %p446 = scmp.ne.s32.totalorder %s441, %s443
      %p447 = scmp.eq.s32.totalorder %s34, 0
      %p448 = por %p446, %p447
      %p449 = scmp.ne.s32.totalorder %s441, %s443
      %p450 = scmp.eq.s32.totalorder %s39, 2
      %p451 = por %p449, %p450
      %p452 = scmp.ne.s32.totalorder %s443, %s444
      %p453 = scmp.eq.s32.totalorder %s39, 0
      %p454 = por %p452, %p453
      %p455 = scmp.ne.s32.totalorder %s443, %s444
      %p456 = scmp.eq.s32.totalorder %s40, 2
      %p457 = por %p455, %p456
      %p459 = scmp.ne.s32.totalorder %s444, %s458
      %p460 = scmp.eq.s32.totalorder %s40, 0
      %p461 = por %p459, %p460
      %s462 = ssub.s32 %s34, %s41
      %p463 = scmp.eq.s32.totalorder %s462, 0
      %s465 = sadd.s32 %s464, 1
      %s466 = scalar_select %p463, %s464, %s465
      %p469 = pneg %p463
      %p470 = scmp.eq.s32.totalorder %s34, 2
      %p471 = por %p469, %p470
      %p472 = scmp.ne.s32.totalorder %s464, %s467
      %p473 = scmp.eq.s32.totalorder %s34, 0
      %p474 = por %p472, %p473
      %p475 = scmp.ne.s32.totalorder %s464, %s467
      %p476 = scmp.eq.s32.totalorder %s39, 2
      %p477 = por %p475, %p476
      %p478 = scmp.ne.s32.totalorder %s467, %s468
      %p479 = scmp.eq.s32.totalorder %s39, 0
      %p480 = por %p478, %p479
      %p481 = scmp.ne.s32.totalorder %s467, %s468
      %p482 = scmp.eq.s32.totalorder %s40, 2
      %p483 = por %p481, %p482
      %p485 = scmp.ne.s32.totalorder %s468, %s484
      %p486 = scmp.eq.s32.totalorder %s40, 0
      %p487 = por %p485, %p486
      %s488 = ssub.s32 %s34, %s41
      %p489 = scmp.eq.s32.totalorder %s488, 0
      %s491 = sadd.s32 %s490, 1
      %s492 = scalar_select %p489, %s490, %s491
      %p495 = pneg %p489
      %p496 = scmp.eq.s32.totalorder %s34, 2
      %p497 = por %p495, %p496
      %p498 = scmp.ne.s32.totalorder %s490, %s493
      %p499 = scmp.eq.s32.totalorder %s34, 0
      %p500 = por %p498, %p499
      %p501 = scmp.ne.s32.totalorder %s490, %s493
      %p502 = scmp.eq.s32.totalorder %s39, 2
      %p503 = por %p501, %p502
      %p504 = scmp.ne.s32.totalorder %s493, %s494
      %p505 = scmp.eq.s32.totalorder %s39, 0
      %p506 = por %p504, %p505
      %p507 = scmp.ne.s32.totalorder %s493, %s494
      %p508 = scmp.eq.s32.totalorder %s40, 2
      %p509 = por %p507, %p508
      %p511 = scmp.ne.s32.totalorder %s494, %s510
      %p512 = scmp.eq.s32.totalorder %s40, 0
      %p513 = por %p511, %p512
      %p514 = scmp.le.s32.totalorder 1, %s34
      %p515 = scmp.lt.s32.totalorder %s34, 4
      %p516 = pnand %p514, %p515
      %p517 = pneg %p516
      // Predicated region
      $region9: #{_gpt2_autoreg.1} parent=5 // pred_check
        _
      $region10: #{_gpt2_autoreg.1} parent=5 // pred_check_branch
        %519 = sbr.rel (%p516) target = $region12
      $region11: #{_gpt2_autoreg.1} parent=5 // pred_region
        %s520 = ssub.s32 %s34, 1
        // Predicated region
        $region13: #{_gpt2_autoreg.1} parent=11 // pred_check
          %p521 = pneg %p55
        $region14: #{_gpt2_autoreg.1} parent=11 // pred_check_branch
          %523 = sbr.rel (%p521) target = $region16
        $region15: #{_gpt2_autoreg.1} parent=11 // pred_region
          _
        $region16: #{_gpt2_autoreg.1} parent=11 // pred_fallthru
          _
        // Predicated region
        $region17: #{_gpt2_autoreg.1} parent=11 // pred_check
          %p524 = pneg %p76
        $region18: #{_gpt2_autoreg.1} parent=11 // pred_check_branch
          %526 = sbr.rel (%p524) target = $region20
        $region19: #{_gpt2_autoreg.1} parent=11 // pred_region
          _
        $region20: #{_gpt2_autoreg.1} parent=11 // pred_fallthru
          _
        // Predicated region
        $region21: #{_gpt2_autoreg.1} parent=11 // pred_check
          %p527 = pneg %p97
        $region22: #{_gpt2_autoreg.1} parent=11 // pred_check_branch
          %529 = sbr.rel (%p527) target = $region24
        $region23: #{_gpt2_autoreg.1} parent=11 // pred_region
          _
        $region24: #{_gpt2_autoreg.1} parent=11 // pred_fallthru
          _
        // Predicated region
        $region25: #{_gpt2_autoreg.1} parent=11 // pred_check
          %p530 = pneg %p118
        $region26: #{_gpt2_autoreg.1} parent=11 // pred_check_branch
          %532 = sbr.rel (%p530) target = $region28
        $region27: #{_gpt2_autoreg.1} parent=11 // pred_region
          _
        $region28: #{_gpt2_autoreg.1} parent=11 // pred_fallthru
          _
        // Predicated region
        $region29: #{_gpt2_autoreg.1} parent=11 // pred_check
          %p533 = pneg %p139
        $region30: #{_gpt2_autoreg.1} parent=11 // pred_check_branch
          %535 = sbr.rel (%p533) target = $region32
        $region31: #{_gpt2_autoreg.1} parent=11 // pred_region
          _
        $region32: #{_gpt2_autoreg.1} parent=11 // pred_fallthru
          _
        // Predicated region
        $region33: #{_gpt2_autoreg.1} parent=11 // pred_check
          %p536 = pneg %p160
        $region34: #{_gpt2_autoreg.1} parent=11 // pred_check_branch
          %538 = sbr.rel (%p536) target = $region36
        $region35: #{_gpt2_autoreg.1} parent=11 // pred_region
          _
        $region36: #{_gpt2_autoreg.1} parent=11 // pred_fallthru
          _
        // Predicated region
        $region37: #{_gpt2_autoreg.1} parent=11 // pred_check
          %p539 = pneg %p181
        $region38: #{_gpt2_autoreg.1} parent=11 // pred_check_branch
          %541 = sbr.rel (%p539) target = $region40
        $region39: #{_gpt2_autoreg.1} parent=11 // pred_region
          _
        $region40: #{_gpt2_autoreg.1} parent=11 // pred_fallthru
          _
        // Predicated region
        $region41: #{_gpt2_autoreg.1} parent=11 // pred_check
          %p542 = pneg %p202
        $region42: #{_gpt2_autoreg.1} parent=11 // pred_check_branch
          %544 = sbr.rel (%p542) target = $region44
        $region43: #{_gpt2_autoreg.1} parent=11 // pred_region
          _
        $region44: #{_gpt2_autoreg.1} parent=11 // pred_fallthru
          _
        // Predicated region
        $region45: #{_gpt2_autoreg.1} parent=11 // pred_check
          %p545 = pneg %p223
        $region46: #{_gpt2_autoreg.1} parent=11 // pred_check_branch
          %547 = sbr.rel (%p545) target = $region48
        $region47: #{_gpt2_autoreg.1} parent=11 // pred_region
          _
        $region48: #{_gpt2_autoreg.1} parent=11 // pred_fallthru
          _
        // Predicated region
        $region49: #{_gpt2_autoreg.1} parent=11 // pred_check
          %p548 = pneg %p244
        $region50: #{_gpt2_autoreg.1} parent=11 // pred_check_branch
          %550 = sbr.rel (%p548) target = $region52
        $region51: #{_gpt2_autoreg.1} parent=11 // pred_region
          _
        $region52: #{_gpt2_autoreg.1} parent=11 // pred_fallthru
          _
        // Predicated region
        $region53: #{_gpt2_autoreg.1} parent=11 // pred_check
          %p551 = pneg %p265
        $region54: #{_gpt2_autoreg.1} parent=11 // pred_check_branch
          %553 = sbr.rel (%p551) target = $region56
        $region55: #{_gpt2_autoreg.1} parent=11 // pred_region
          _
        $region56: #{_gpt2_autoreg.1} parent=11 // pred_fallthru
          _
        // Predicated region
        $region57: #{_gpt2_autoreg.1} parent=11 // pred_check
          %p554 = pneg %p286
        $region58: #{_gpt2_autoreg.1} parent=11 // pred_check_branch
          %556 = sbr.rel (%p554) target = $region60
        $region59: #{_gpt2_autoreg.1} parent=11 // pred_region
          _
        $region60: #{_gpt2_autoreg.1} parent=11 // pred_fallthru
          _
        // Predicated region
        $region61: #{_gpt2_autoreg.1} parent=11 // pred_check
          %p557 = pneg %p307
        $region62: #{_gpt2_autoreg.1} parent=11 // pred_check_branch
          %559 = sbr.rel (%p557) target = $region64
        $region63: #{_gpt2_autoreg.1} parent=11 // pred_region
          _
        $region64: #{_gpt2_autoreg.1} parent=11 // pred_fallthru
          _
        // Predicated region
        $region65: #{_gpt2_autoreg.1} parent=11 // pred_check
          %p560 = pneg %p328
        $region66: #{_gpt2_autoreg.1} parent=11 // pred_check_branch
          %562 = sbr.rel (%p560) target = $region68
        $region67: #{_gpt2_autoreg.1} parent=11 // pred_region
          _
        $region68: #{_gpt2_autoreg.1} parent=11 // pred_fallthru
          _
        // Predicated region
        $region69: #{_gpt2_autoreg.1} parent=11 // pred_check
          %p563 = pneg %p349
        $region70: #{_gpt2_autoreg.1} parent=11 // pred_check_branch
          %565 = sbr.rel (%p563) target = $region72
        $region71: #{_gpt2_autoreg.1} parent=11 // pred_region
          _
        $region72: #{_gpt2_autoreg.1} parent=11 // pred_fallthru
          _
        // Predicated region
        $region73: #{_gpt2_autoreg.1} parent=11 // pred_check
          %p566 = pneg %p370
        $region74: #{_gpt2_autoreg.1} parent=11 // pred_check_branch
          %568 = sbr.rel (%p566) target = $region76
        $region75: #{_gpt2_autoreg.1} parent=11 // pred_region
          _
        $region76: #{_gpt2_autoreg.1} parent=11 // pred_fallthru
          _
        // Predicated region
        $region77: #{_gpt2_autoreg.1} parent=11 // pred_check
          %p569 = pneg %p391
        $region78: #{_gpt2_autoreg.1} parent=11 // pred_check_branch
          %571 = sbr.rel (%p569) target = $region80
        $region79: #{_gpt2_autoreg.1} parent=11 // pred_region
          _
        $region80: #{_gpt2_autoreg.1} parent=11 // pred_fallthru
          _
        // Predicated region
        $region81: #{_gpt2_autoreg.1} parent=11 // pred_check
          %p572 = pneg %p412
        $region82: #{_gpt2_autoreg.1} parent=11 // pred_check_branch
          %574 = sbr.rel (%p572) target = $region84
        $region83: #{_gpt2_autoreg.1} parent=11 // pred_region
          _
        $region84: #{_gpt2_autoreg.1} parent=11 // pred_fallthru
          _
        // Predicated region
        $region85: #{_gpt2_autoreg.1} parent=11 // pred_check
          %p575 = pneg %p433
        $region86: #{_gpt2_autoreg.1} parent=11 // pred_check_branch
          %577 = sbr.rel (%p575) target = $region88
        $region87: #{_gpt2_autoreg.1} parent=11 // pred_region
          _
        $region88: #{_gpt2_autoreg.1} parent=11 // pred_fallthru
          _
        // Predicated region
        $region89: #{_gpt2_autoreg.1} parent=11 // pred_check
          %p578 = pneg %p454
        $region90: #{_gpt2_autoreg.1} parent=11 // pred_check_branch
          %580 = sbr.rel (%p578) target = $region92
        $region91: #{_gpt2_autoreg.1} parent=11 // pred_region
          _
        $region92: #{_gpt2_autoreg.1} parent=11 // pred_fallthru
          _
      $region12: #{_gpt2_autoreg.1} parent=5 // pred_fallthru
        _
      %p581 = scmp.lt.s32.totalorder %s34, 3
      // Predicated region
      $region93: #{_gpt2_autoreg.1} parent=5 // pred_check
        %p582 = pneg %p581
      $region94: #{_gpt2_autoreg.1} parent=5 // pred_check_branch
        %584 = sbr.rel (%p582) target = $region96
      $region95: #{_gpt2_autoreg.1} parent=5 // pred_region
        _
      $region96: #{_gpt2_autoreg.1} parent=5 // pred_fallthru
        _
      %p585 = scmp.le.s32.totalorder 1, %s34
      %p586 = scmp.lt.s32.totalorder %s34, 4
      %p587 = pnand %p585, %p586
      %p588 = pneg %p587
      // Predicated region
      $region97: #{_gpt2_autoreg.1} parent=5 // pred_check
        _
      $region98: #{_gpt2_autoreg.1} parent=5 // pred_check_branch
        %590 = sbr.rel (%p587) target = $region100
      $region99: #{_gpt2_autoreg.1} parent=5 // pred_region
        %s591 = ssub.s32 %s34, 1
        %p592 = pneg %p55
        %p593 = pneg %p52
        %p594 = pneg %p76
        %p595 = pneg %p73
        %p596 = pneg %p97
        %p597 = pneg %p94
        %p598 = pneg %p118
        %p599 = pneg %p115
        %p600 = pneg %p139
        %p601 = pneg %p136
        %p602 = pneg %p160
        %p603 = pneg %p157
        %p604 = pneg %p181
        %p605 = pneg %p178
        %p606 = pneg %p202
        %p607 = pneg %p199
        %p608 = pneg %p223
        %p609 = pneg %p220
        %p610 = pneg %p244
        %p611 = pneg %p241
        %p612 = pneg %p265
        %p613 = pneg %p262
        %p614 = pneg %p286
        %p615 = pneg %p283
        %p616 = pneg %p307
        %p617 = pneg %p304
        %p618 = pneg %p328
        %p619 = pneg %p325
        %p620 = pneg %p349
        %p621 = pneg %p346
        %p622 = pneg %p370
        %p623 = pneg %p367
        %p624 = pneg %p391
        %p625 = pneg %p388
        %p626 = pneg %p412
        %p627 = pneg %p409
        %p628 = pneg %p433
        %p629 = pneg %p430
        %p630 = pneg %p454
        %p631 = pneg %p451
        %p632 = pneg %p480
        %p633 = pneg %p477
        %s634 = sand.u32 %s467, 1
        %s635 = scalar_lea.sflag [#allocation4], %s634
        %s636 = sand.u32 %s467, 1
        %s637 = smul.addr %s636, 2
        %s638 = scalar_lea.vmem [#allocation3], %s637
        %p639 = pneg %p506
        %p640 = pneg %p503
        %s641 = sand.u32 %s493, 1
        %s642 = scalar_lea.sflag [#allocation6], %s641
        %s643 = sand.u32 %s493, 1
        %s644 = smul.addr %s643, 32
        %s645 = scalar_lea.vmem [#allocation5], %s644
        %s646 = sadd.s32 %s39, 8
        %p647 = scmp.eq.s32.totalorder %s39, 0
        // Predicated region
        $region101: #{_gpt2_autoreg.1} parent=99 // pred_check
          %p648 = pneg %p647
        $region102: #{_gpt2_autoreg.1} parent=99 // pred_check_branch
          %650 = sbr.rel (%p648) target = $region104
        $region103: #{_gpt2_autoreg.1} parent=99 // pred_region
          %v651 = vld [vmem:[%s0] sm:$0xff]
          %v652 = vld [vmem:[%s0 + $0x8] sm:$0xff]
          %v653 = vld [vmem:[%s0 + $0x10] sm:$0xff]
          %v654 = vld [vmem:[%s0 + $0x18] sm:$0xff]
          %vm655 = vcmask 64512
          %656 = vst.msk [vmem:[#allocation2] sm:$0xff] %vm655, %v651
          %657 = vst.msk [vmem:[#allocation2 + $0x8] sm:$0xff] %vm655, %v652
          %658 = vst.msk [vmem:[#allocation2 + $0x10] sm:$0xff] %vm655, %v653
          %659 = vst.msk [vmem:[#allocation2 + $0x18] sm:$0xff] %vm655, %v654
        $region104: #{_gpt2_autoreg.1} parent=99 // pred_fallthru
          _
        %v660 = vld [vmem:[#allocation2] sm:$0xff]
        %v661 = vld [vmem:[#allocation2 + $0x8] sm:$0xff]
        %v662 = vld [vmem:[#allocation2 + $0x10] sm:$0xff]
        %v663 = vld [vmem:[#allocation2 + $0x18] sm:$0xff]
        %v664 = vld [vmem:[%s1] sm:$0xff]
        %v665 = vld [vmem:[%s2] sm:$0x1]
        %v667 = vlaneseq
        %v668 = vshrl.u32 %v667, 7
        %v669 = vsub.s32 0, %v668
        %v670 = vrot.slane %v665, %v669
        %vm672 = vcmask 64512
        %v674 = vsel %vm672, %v660, 0
        %v677 = vsel %vm672, %v661, 0
        %v680 = vsel %vm672, %v662, 0
        %v683 = vsel %vm672, %v663, 0
        %685 = vmatprep.subr.mxu0 0.0
        %686 = vmatpush1.msra.mxu0 %v664
        %687 = vmatprep.subr.mxu0 0.0
        %688 = vmatpush1.msra.mxu0 0.0
        %689 = vmatprep.subr.mxu0 0.0
        %690 = vmatpush1.msra.mxu0 0.0
        %691 = vmatprep.subr.mxu0 0.0
        %692 = vmatpush1.msra.mxu0 0.0
        %693 = vmatprep.subr.mxu0 0.0
        %694 = vmatpush1.msra.mxu0 0.0
        %695 = vmatprep.subr.mxu0 0.0
        %696 = vmatpush1.msra.mxu0 0.0
        %697 = vmatprep.subr.mxu0 0.0
        %698 = vmatpush1.msra.mxu0 0.0
        %699 = vmatprep.subr.mxu0 0.0
        %700 = vmatpush1.msra.mxu0 0.0
        %701 = vmatprep.subr.mxu0 0.0
        %702 = vmatpush1.msra.mxu0 0.0
        %703 = vmatprep.subr.mxu0 0.0
        %704 = vmatpush1.msra.mxu0 0.0
        %705 = vmatprep.subr.mxu0 0.0
        %706 = vmatpush1.msra.mxu0 0.0
        %707 = vmatprep.subr.mxu0 0.0
        %708 = vmatpush1.msra.mxu0 0.0
        %709 = vmatprep.subr.mxu0 0.0
        %710 = vmatpush1.msra.mxu0 0.0
        %711 = vmatprep.subr.mxu0 0.0
        %712 = vmatpush1.msra.mxu0 0.0
        %713 = vmatprep.subr.mxu0 0.0
        %714 = vmatpush1.msra.mxu0 0.0
        %715 = vmatprep.subr.mxu0 0.0
        %716 = vmatpush1.msra.mxu0 0.0
        %717 = vmatprep.subr.mxu0 0.0
        %718 = vmatpush1.msra.mxu0 0.0
        %719 = vmatprep.subr.mxu0 0.0
        %720 = vmatpush1.msra.mxu0 0.0
        %721 = vmatprep.subr.mxu0 0.0
        %722 = vmatpush1.msra.mxu0 0.0
        %723 = vmatprep.subr.mxu0 0.0
        %724 = vmatpush1.msra.mxu0 0.0
        %725 = vmatprep.subr.mxu0 0.0
        %726 = vmatpush1.msra.mxu0 0.0
        %727 = vmatprep.subr.mxu0 0.0
        %728 = vmatpush1.msra.mxu0 0.0
        %729 = vmatprep.subr.mxu0 0.0
        %730 = vmatpush1.msra.mxu0 0.0
        %731 = vmatprep.subr.mxu0 0.0
        %732 = vmatpush1.msra.mxu0 0.0
        %733 = vmatprep.subr.mxu0 0.0
        %734 = vmatpush1.msra.mxu0 0.0
        %735 = vmatprep.subr.mxu0 0.0
        %736 = vmatpush1.msra.mxu0 0.0
        %737 = vmatprep.subr.mxu0 0.0
        %738 = vmatpush1.msra.mxu0 0.0
        %739 = vmatprep.subr.mxu0 0.0
        %740 = vmatpush1.msra.mxu0 0.0
        %741 = vmatprep.subr.mxu0 0.0
        %742 = vmatpush1.msra.mxu0 0.0
        %743 = vmatprep.subr.mxu0 0.0
        %744 = vmatpush1.msra.mxu0 0.0
        %745 = vmatprep.subr.mxu0 0.0
        %746 = vmatpush1.msra.mxu0 0.0
        %747 = vmatprep.subr.mxu0 0.0
        %748 = vmatpush1.msra.mxu0 0.0
        %749 = vmatprep.mubr.f32.mxu0 0.0
        %750 = vmatmul.mubr.f32.gmra.mrb[0].mxu0 %v674
        %v751 = vpop.f32.mrb[0].mxu0
        %v752 = vadd.f32 %v670, %v751
        %v753 = vpop.f32.mrb[0].mxu0
        %754 = vmatprep.mubr.f32.mxu0 0.0
        %755 = vmatmul.mubr.f32.gmra.mrb[0].mxu0 %v677
        %v756 = vpop.f32.mrb[0].mxu0
        %v757 = vadd.f32 %v670, %v756
        %v758 = vpop.f32.mrb[0].mxu0
        %759 = vmatprep.mubr.f32.mxu0 0.0
        %760 = vmatmul.mubr.f32.gmra.mrb[0].mxu0 %v680
        %v761 = vpop.f32.mrb[0].mxu0
        %v762 = vadd.f32 %v670, %v761
        %v763 = vpop.f32.mrb[0].mxu0
        %764 = vmatprep.mubr.f32.mxu0 0.0
        %765 = vmatmul.mubr.f32.gmra.mrb[0].mxu0 %v683
        %v766 = vpop.f32.mrb[0].mxu0
        %v767 = vadd.f32 %v670, %v766
        %v768 = vpop.f32.mrb[0].mxu0
        %769 = vdwg.mxu0
        %v770 = vsel %vm672, %v752, 0.0
        %771 = vadd.xlane.f32.xlu0 %v770
        %v772 = vpop.xlane.xlu0 %771
        %v773 = vsel %vm672, %v757, 0.0
        %774 = vadd.xlane.f32.xlu0 %v773
        %v775 = vpop.xlane.xlu0 %774
        %v776 = vsel %vm672, %v762, 0.0
        %777 = vadd.xlane.f32.xlu0 %v776
        %v778 = vpop.xlane.xlu0 %777
        %v779 = vsel %vm672, %v767, 0.0
        %780 = vadd.xlane.f32.xlu0 %v779
        %v781 = vpop.xlane.xlu0 %780
        %v782 = vrcp.pop 8.0
        %v783 = vmul.f32 %v772, %v782
        %v784 = vmul.f32 %v775, %v782
        %v785 = vmul.f32 %v778, %v782
        %v786 = vmul.f32 %v781, %v782
        %v787 = vsub.f32 %v752, %v783
        %v788 = vsub.f32 %v757, %v784
        %v789 = vsub.f32 %v762, %v785
        %v790 = vsub.f32 %v767, %v786
        %v791 = vmul.f32 %v787, %v787
        %v792 = vmul.f32 %v788, %v788
        %v793 = vmul.f32 %v789, %v789
        %v794 = vmul.f32 %v790, %v790
        %v795 = vsel %vm672, %v791, 0.0
        %796 = vadd.xlane.f32.xlu0 %v795
        %v797 = vpop.xlane.xlu0 %796
        %v798 = vsel %vm672, %v792, 0.0
        %799 = vadd.xlane.f32.xlu0 %v798
        %v800 = vpop.xlane.xlu0 %799
        %v801 = vsel %vm672, %v793, 0.0
        %802 = vadd.xlane.f32.xlu0 %v801
        %v803 = vpop.xlane.xlu0 %802
        %v804 = vsel %vm672, %v794, 0.0
        %805 = vadd.xlane.f32.xlu0 %v804
        %v806 = vpop.xlane.xlu0 %805
        %v807 = vmul.f32 %v797, %v782
        %v808 = vmul.f32 %v800, %v782
        %v809 = vmul.f32 %v803, %v782
        %v810 = vmul.f32 %v806, %v782
        %v811 = vadd.f32 %v807, 1e-05
        %v812 = vadd.f32 %v808, 1e-05
        %v813 = vadd.f32 %v809, 1e-05
        %v814 = vadd.f32 %v810, 1e-05
        %v815 = vrsqrt.pop %v811
        %v816 = vrsqrt.pop %v812
        %v817 = vrsqrt.pop %v813
        %v818 = vrsqrt.pop %v814
        %v819 = vmul.f32 %v787, %v815
        %v820 = vmul.f32 %v788, %v816
        %v821 = vmul.f32 %v789, %v817
        %v822 = vmul.f32 %v790, %v818
        %v823 = vld [vmem:[%s3] sm:$0x1]
        %v825 = vlaneseq
        %v826 = vshrl.u32 %v825, 7
        %v827 = vsub.s32 0, %v826
        %v828 = vrot.slane %v823, %v827
        %v830 = vmul.f32 %v819, %v828
        %v831 = vmul.f32 %v820, %v828
        %v832 = vmul.f32 %v821, %v828
        %v833 = vmul.f32 %v822, %v828
        %v834 = vld [vmem:[%s4] sm:$0x1]
        %v836 = vlaneseq
        %v837 = vshrl.u32 %v836, 7
        %v838 = vsub.s32 0, %v837
        %v839 = vrot.slane %v834, %v838
        %v841 = vadd.f32 %v830, %v839
        %v842 = vadd.f32 %v831, %v839
        %v843 = vadd.f32 %v832, %v839
        %v844 = vadd.f32 %v833, %v839
        %v845 = vld [vmem:[%s5] sm:$0xff]
        %v846 = vld [vmem:[%s6] sm:$0x1]
        %v848 = vlaneseq
        %v849 = vshrl.u32 %v848, 7
        %v850 = vsub.s32 0, %v849
        %v851 = vrot.slane %v846, %v850
        %v854 = vsel %vm672, %v841, 0
        %v857 = vsel %vm672, %v842, 0
        %v860 = vsel %vm672, %v843, 0
        %v863 = vsel %vm672, %v844, 0
        %865 = vmatprep.subr.mxu0 0.0
        %866 = vmatpush1.msra.mxu0 %v845
        %867 = vmatprep.subr.mxu0 0.0
        %868 = vmatpush1.msra.mxu0 0.0
        %869 = vmatprep.subr.mxu0 0.0
        %870 = vmatpush1.msra.mxu0 0.0
        %871 = vmatprep.subr.mxu0 0.0
        %872 = vmatpush1.msra.mxu0 0.0
        %873 = vmatprep.subr.mxu0 0.0
        %874 = vmatpush1.msra.mxu0 0.0
        %875 = vmatprep.subr.mxu0 0.0
        %876 = vmatpush1.msra.mxu0 0.0
        %877 = vmatprep.subr.mxu0 0.0
        %878 = vmatpush1.msra.mxu0 0.0
        %879 = vmatprep.subr.mxu0 0.0
        %880 = vmatpush1.msra.mxu0 0.0
        %881 = vmatprep.subr.mxu0 0.0
        %882 = vmatpush1.msra.mxu0 0.0
        %883 = vmatprep.subr.mxu0 0.0
        %884 = vmatpush1.msra.mxu0 0.0
        %885 = vmatprep.subr.mxu0 0.0
        %886 = vmatpush1.msra.mxu0 0.0
        %887 = vmatprep.subr.mxu0 0.0
        %888 = vmatpush1.msra.mxu0 0.0
        %889 = vmatprep.subr.mxu0 0.0
        %890 = vmatpush1.msra.mxu0 0.0
        %891 = vmatprep.subr.mxu0 0.0
        %892 = vmatpush1.msra.mxu0 0.0
        %893 = vmatprep.subr.mxu0 0.0
        %894 = vmatpush1.msra.mxu0 0.0
        %895 = vmatprep.subr.mxu0 0.0
        %896 = vmatpush1.msra.mxu0 0.0
        %897 = vmatprep.subr.mxu0 0.0
        %898 = vmatpush1.msra.mxu0 0.0
        %899 = vmatprep.subr.mxu0 0.0
        %900 = vmatpush1.msra.mxu0 0.0
        %901 = vmatprep.subr.mxu0 0.0
        %902 = vmatpush1.msra.mxu0 0.0
        %903 = vmatprep.subr.mxu0 0.0
        %904 = vmatpush1.msra.mxu0 0.0
        %905 = vmatprep.subr.mxu0 0.0
        %906 = vmatpush1.msra.mxu0 0.0
        %907 = vmatprep.subr.mxu0 0.0
        %908 = vmatpush1.msra.mxu0 0.0
        %909 = vmatprep.subr.mxu0 0.0
        %910 = vmatpush1.msra.mxu0 0.0
        %911 = vmatprep.subr.mxu0 0.0
        %912 = vmatpush1.msra.mxu0 0.0
        %913 = vmatprep.subr.mxu0 0.0
        %914 = vmatpush1.msra.mxu0 0.0
        %915 = vmatprep.subr.mxu0 0.0
        %916 = vmatpush1.msra.mxu0 0.0
        %917 = vmatprep.subr.mxu0 0.0
        %918 = vmatpush1.msra.mxu0 0.0
        %919 = vmatprep.subr.mxu0 0.0
        %920 = vmatpush1.msra.mxu0 0.0
        %921 = vmatprep.subr.mxu0 0.0
        %922 = vmatpush1.msra.mxu0 0.0
        %923 = vmatprep.subr.mxu0 0.0
        %924 = vmatpush1.msra.mxu0 0.0
        %925 = vmatprep.subr.mxu0 0.0
        %926 = vmatpush1.msra.mxu0 0.0
        %927 = vmatprep.subr.mxu0 0.0
        %928 = vmatpush1.msra.mxu0 0.0
        %929 = vmatprep.mubr.f32.mxu0 0.0
        %930 = vmatmul.mubr.f32.gmra.mrb[0].mxu0 %v854
        %v931 = vpop.f32.mrb[0].mxu0
        %v932 = vadd.f32 %v851, %v931
        %v933 = vpop.f32.mrb[0].mxu0
        %934 = vmatprep.mubr.f32.mxu0 0.0
        %935 = vmatmul.mubr.f32.gmra.mrb[0].mxu0 %v857
        %v936 = vpop.f32.mrb[0].mxu0
        %v937 = vadd.f32 %v851, %v936
        %v938 = vpop.f32.mrb[0].mxu0
        %939 = vmatprep.mubr.f32.mxu0 0.0
        %940 = vmatmul.mubr.f32.gmra.mrb[0].mxu0 %v860
        %v941 = vpop.f32.mrb[0].mxu0
        %v942 = vadd.f32 %v851, %v941
        %v943 = vpop.f32.mrb[0].mxu0
        %944 = vmatprep.mubr.f32.mxu0 0.0
        %945 = vmatmul.mubr.f32.gmra.mrb[0].mxu0 %v863
        %v946 = vpop.f32.mrb[0].mxu0
        %v947 = vadd.f32 %v851, %v946
        %v948 = vpop.f32.mrb[0].mxu0
        %949 = vdwg.mxu0
        %952 = vrot.lane.b32.xlu0 %v932, 120
        %v953 = vpop.permute.xlu0 %952
        %954 = vrot.lane.b32.xlu0 %v937, 120
        %v955 = vpop.permute.xlu0 %954
        %v956 = vsel %vm672, %v932, 0
        %v958 = vsel %vm672, %v937, 0
        %v960 = vsel %vm672, %v953, 0
        %v962 = vsel %vm672, %v955, 0
        %964 = vmatprep.subr.mxu0 0.0
        %965 = vmatpush1.xpose.msra.mxu0 %v960
        %966 = vmatprep.subr.mxu0 0.0
        %967 = vmatpush1.xpose.msra.mxu0 %v962
        %968 = vmatprep.subr.mxu0 0.0
        %969 = vmatpush1.xpose.msra.mxu0 0.0
        %970 = vmatprep.subr.mxu0 0.0
        %971 = vmatpush1.xpose.msra.mxu0 0.0
        %972 = vmatprep.subr.mxu0 0.0
        %973 = vmatpush1.xpose.msra.mxu0 0.0
        %974 = vmatprep.subr.mxu0 0.0
        %975 = vmatpush1.xpose.msra.mxu0 0.0
        %976 = vmatprep.subr.mxu0 0.0
        %977 = vmatpush1.xpose.msra.mxu0 0.0
        %978 = vmatprep.subr.mxu0 0.0
        %979 = vmatpush1.xpose.msra.mxu0 0.0
        %980 = vmatprep.subr.mxu0 0.0
        %981 = vmatpush1.xpose.msra.mxu0 0.0
        %982 = vmatprep.subr.mxu0 0.0
        %983 = vmatpush1.xpose.msra.mxu0 0.0
        %984 = vmatprep.subr.mxu0 0.0
        %985 = vmatpush1.xpose.msra.mxu0 0.0
        %986 = vmatprep.subr.mxu0 0.0
        %987 = vmatpush1.xpose.msra.mxu0 0.0
        %988 = vmatprep.subr.mxu0 0.0
        %989 = vmatpush1.xpose.msra.mxu0 0.0
        %990 = vmatprep.subr.mxu0 0.0
        %991 = vmatpush1.xpose.msra.mxu0 0.0
        %992 = vmatprep.subr.mxu0 0.0
        %993 = vmatpush1.xpose.msra.mxu0 0.0
        %994 = vmatprep.subr.mxu0 0.0
        %995 = vmatpush1.xpose.msra.mxu0 0.0
        %996 = vmatprep.subr.mxu0 0.0
        %997 = vmatpush1.xpose.msra.mxu0 0.0
        %998 = vmatprep.subr.mxu0 0.0
        %999 = vmatpush1.xpose.msra.mxu0 0.0
        %1000 = vmatprep.subr.mxu0 0.0
        %1001 = vmatpush1.xpose.msra.mxu0 0.0
        %1002 = vmatprep.subr.mxu0 0.0
        %1003 = vmatpush1.xpose.msra.mxu0 0.0
        %1004 = vmatprep.subr.mxu0 0.0
        %1005 = vmatpush1.xpose.msra.mxu0 0.0
        %1006 = vmatprep.subr.mxu0 0.0
        %1007 = vmatpush1.xpose.msra.mxu0 0.0
        %1008 = vmatprep.subr.mxu0 0.0
        %1009 = vmatpush1.xpose.msra.mxu0 0.0
        %1010 = vmatprep.subr.mxu0 0.0
        %1011 = vmatpush1.xpose.msra.mxu0 0.0
        %1012 = vmatprep.subr.mxu0 0.0
        %1013 = vmatpush1.xpose.msra.mxu0 0.0
        %1014 = vmatprep.subr.mxu0 0.0
        %1015 = vmatpush1.xpose.msra.mxu0 0.0
        %1016 = vmatprep.subr.mxu0 0.0
        %1017 = vmatpush1.xpose.msra.mxu0 0.0
        %1018 = vmatprep.subr.mxu0 0.0
        %1019 = vmatpush1.xpose.msra.mxu0 0.0
        %1020 = vmatprep.subr.mxu0 0.0
        %1021 = vmatpush1.xpose.msra.mxu0 0.0
        %1022 = vmatprep.subr.mxu0 0.0
        %1023 = vmatpush1.xpose.msra.mxu0 0.0
        %1024 = vmatprep.subr.mxu0 0.0
        %1025 = vmatpush1.xpose.msra.mxu0 0.0
        %1026 = vmatprep.subr.mxu0 0.0
        %1027 = vmatpush1.xpose.msra.mxu0 0.0
        %1028 = vmatprep.mubr.f32.mxu0 0.0
        %1029 = vmatmul.mubr.f32.gmra.mrb[0].mxu0 %v956
        %v1030 = vpop.f32.mrb[0].mxu0
        %v1031 = vadd.f32 0.0, %v1030
        %v1032 = vpop.f32.mrb[0].mxu0
        %1033 = vmatprep.mubr.f32.mxu0 0.0
        %1034 = vmatmul.mubr.f32.gmra.mrb[0].mxu0 %v958
        %v1035 = vpop.f32.mrb[0].mxu0
        %v1036 = vadd.f32 0.0, %v1035
        %v1037 = vpop.f32.mrb[0].mxu0
        %1038 = vdwg.mxu0
        %1041 = vrot.lane.b32.xlu0 %v942, 120
        %v1042 = vpop.permute.xlu0 %1041
        %1043 = vrot.lane.b32.xlu0 %v947, 120
        %v1044 = vpop.permute.xlu0 %1043
        %v1045 = vsel %vm672, %v942, 0
        %v1047 = vsel %vm672, %v947, 0
        %v1049 = vsel %vm672, %v1042, 0
        %v1051 = vsel %vm672, %v1044, 0
        %1053 = vmatprep.subr.mxu0 0.0
        %1054 = vmatpush1.xpose.msra.mxu0 %v1049
        %1055 = vmatprep.subr.mxu0 0.0
        %1056 = vmatpush1.xpose.msra.mxu0 %v1051
        %1057 = vmatprep.subr.mxu0 0.0
        %1058 = vmatpush1.xpose.msra.mxu0 0.0
        %1059 = vmatprep.subr.mxu0 0.0
        %1060 = vmatpush1.xpose.msra.mxu0 0.0
        %1061 = vmatprep.subr.mxu0 0.0
        %1062 = vmatpush1.xpose.msra.mxu0 0.0
        %1063 = vmatprep.subr.mxu0 0.0
        %1064 = vmatpush1.xpose.msra.mxu0 0.0
        %1065 = vmatprep.subr.mxu0 0.0
        %1066 = vmatpush1.xpose.msra.mxu0 0.0
        %1067 = vmatprep.subr.mxu0 0.0
        %1068 = vmatpush1.xpose.msra.mxu0 0.0
        %1069 = vmatprep.subr.mxu0 0.0
        %1070 = vmatpush1.xpose.msra.mxu0 0.0
        %1071 = vmatprep.subr.mxu0 0.0
        %1072 = vmatpush1.xpose.msra.mxu0 0.0
        %1073 = vmatprep.subr.mxu0 0.0
        %1074 = vmatpush1.xpose.msra.mxu0 0.0
        %1075 = vmatprep.subr.mxu0 0.0
        %1076 = vmatpush1.xpose.msra.mxu0 0.0
        %1077 = vmatprep.subr.mxu0 0.0
        %1078 = vmatpush1.xpose.msra.mxu0 0.0
        %1079 = vmatprep.subr.mxu0 0.0
        %1080 = vmatpush1.xpose.msra.mxu0 0.0
        %1081 = vmatprep.subr.mxu0 0.0
        %1082 = vmatpush1.xpose.msra.mxu0 0.0
        %1083 = vmatprep.subr.mxu0 0.0
        %1084 = vmatpush1.xpose.msra.mxu0 0.0
        %1085 = vmatprep.subr.mxu0 0.0
        %1086 = vmatpush1.xpose.msra.mxu0 0.0
        %1087 = vmatprep.subr.mxu0 0.0
        %1088 = vmatpush1.xpose.msra.mxu0 0.0
        %1089 = vmatprep.subr.mxu0 0.0
        %1090 = vmatpush1.xpose.msra.mxu0 0.0
        %1091 = vmatprep.subr.mxu0 0.0
        %1092 = vmatpush1.xpose.msra.mxu0 0.0
        %1093 = vmatprep.subr.mxu0 0.0
        %1094 = vmatpush1.xpose.msra.mxu0 0.0
        %1095 = vmatprep.subr.mxu0 0.0
        %1096 = vmatpush1.xpose.msra.mxu0 0.0
        %1097 = vmatprep.subr.mxu0 0.0
        %1098 = vmatpush1.xpose.msra.mxu0 0.0
        %1099 = vmatprep.subr.mxu0 0.0
        %1100 = vmatpush1.xpose.msra.mxu0 0.0
        %1101 = vmatprep.subr.mxu0 0.0
        %1102 = vmatpush1.xpose.msra.mxu0 0.0
        %1103 = vmatprep.subr.mxu0 0.0
        %1104 = vmatpush1.xpose.msra.mxu0 0.0
        %1105 = vmatprep.subr.mxu0 0.0
        %1106 = vmatpush1.xpose.msra.mxu0 0.0
        %1107 = vmatprep.subr.mxu0 0.0
        %1108 = vmatpush1.xpose.msra.mxu0 0.0
        %1109 = vmatprep.subr.mxu0 0.0
        %1110 = vmatpush1.xpose.msra.mxu0 0.0
        %1111 = vmatprep.subr.mxu0 0.0
        %1112 = vmatpush1.xpose.msra.mxu0 0.0
        %1113 = vmatprep.subr.mxu0 0.0
        %1114 = vmatpush1.xpose.msra.mxu0 0.0
        %1115 = vmatprep.subr.mxu0 0.0
        %1116 = vmatpush1.xpose.msra.mxu0 0.0
        %1117 = vmatprep.mubr.f32.mxu0 0.0
        %1118 = vmatmul.mubr.f32.gmra.mrb[0].mxu0 %v1045
        %v1119 = vpop.f32.mrb[0].mxu0
        %v1120 = vadd.f32 0.0, %v1119
        %v1121 = vpop.f32.mrb[0].mxu0
        %1122 = vmatprep.mubr.f32.mxu0 0.0
        %1123 = vmatmul.mubr.f32.gmra.mrb[0].mxu0 %v1047
        %v1124 = vpop.f32.mrb[0].mxu0
        %v1125 = vadd.f32 0.0, %v1124
        %v1126 = vpop.f32.mrb[0].mxu0
        %1127 = vdwg.mxu0
        %v1128 = vmul.f32 %v1031, 0.35355338
        %v1129 = vmul.f32 %v1036, 0.35355338
        %v1130 = vmul.f32 %v1120, 0.35355338
        %v1131 = vmul.f32 %v1125, 0.35355338
        %v1132 = vlaneseq
        %v1133 = vshrl.u32 %v1132, 7
        %v1134 = vadd.s32 %v1133, 8
        %v1135 = vlaneseq
        %v1136 = vand.u32 %v1135, 127
        %vm1137 = vcmp.ge.s32.totalorder %v1133, %v1136
        %vm1138 = vcmp.ge.s32.totalorder %v1134, %v1136
        %v1139 = vsel %vm1137, 1, 0
        %v1140 = vsel %vm1138, 1, 0
        %vm1141 = vcmp.eq.s32.totalorder %v1139, 1
        %vm1142 = vcmp.eq.s32.totalorder %v1140, 1
        %v1143 = vsel %vm1141, %v1128, -1e+30
        %v1144 = vsel %vm1142, %v1129, -1e+30
        %v1145 = vsel %vm1141, %v1130, -1e+30
        %v1146 = vsel %vm1142, %v1131, -1e+30
        %vm1147 = vcmask 130048
        %v1148 = vsel %vm1147, %v1143, -inf
        %1149 = vmax.xlane.f32.xlu0 %v1148
        %v1150 = vpop.xlane.xlu0 %1149
        %v1151 = vsel %vm1147, %v1144, -inf
        %1152 = vmax.xlane.f32.xlu0 %v1151
        %v1153 = vpop.xlane.xlu0 %1152
        %v1154 = vsel %vm1147, %v1145, -inf
        %1155 = vmax.xlane.f32.xlu0 %v1154
        %v1156 = vpop.xlane.xlu0 %1155
        %v1157 = vsel %vm1147, %v1146, -inf
        %1158 = vmax.xlane.f32.xlu0 %v1157
        %v1159 = vpop.xlane.xlu0 %1158
        %v1160 = vsub.f32 %v1143, %v1150
        %v1161 = vsub.f32 %v1144, %v1153
        %v1162 = vsub.f32 %v1145, %v1156
        %v1163 = vsub.f32 %v1146, %v1159
        %v1164 = vmul.f32 %v1160, 1.442695
        %v1165 = vpow.pop %v1164
        %v1166 = vmul.f32 %v1161, 1.442695
        %v1167 = vpow.pop %v1166
        %v1168 = vmul.f32 %v1162, 1.442695
        %v1169 = vpow.pop %v1168
        %v1170 = vmul.f32 %v1163, 1.442695
        %v1171 = vpow.pop %v1170
        %v1172 = vsel %vm1147, %v1165, 0.0
        %1173 = vadd.xlane.f32.xlu0 %v1172
        %v1174 = vpop.xlane.xlu0 %1173
        %v1175 = vsel %vm1147, %v1167, 0.0
        %1176 = vadd.xlane.f32.xlu0 %v1175
        %v1177 = vpop.xlane.xlu0 %1176
        %v1178 = vsel %vm1147, %v1169, 0.0
        %1179 = vadd.xlane.f32.xlu0 %v1178
        %v1180 = vpop.xlane.xlu0 %1179
        %v1181 = vsel %vm1147, %v1171, 0.0
        %1182 = vadd.xlane.f32.xlu0 %v1181
        %v1183 = vpop.xlane.xlu0 %1182
        %v1184 = vrcp.pop %v1174
        %v1185 = vrcp.pop %v1177
        %v1186 = vrcp.pop %v1180
        %v1187 = vrcp.pop %v1183
        %v1188 = vmul.f32 %v1165, %v1184
        %v1189 = vmul.f32 %v1167, %v1185
        %v1190 = vmul.f32 %v1169, %v1186
        %v1191 = vmul.f32 %v1171, %v1187
        %1192 = vst.msk [vmem:[%s645] sm:$0xff] %vm1147, %v1188
        %1193 = vst.msk [vmem:[%s645 + $0x8] sm:$0xff] %vm1147, %v1189
        %1194 = vst.msk [vmem:[%s645 + $0x10] sm:$0xff] %vm1147, %v1190
        %1195 = vst.msk [vmem:[%s645 + $0x18] sm:$0xff] %vm1147, %v1191
        %s1196 = sadd.s32 %s39, 7
        %v1197 = vstv %s1196
        %vm1198 = vcmp.eq.s32.totalorder %v1133, %v1197
        %vm1199 = vcmp.eq.s32.totalorder %v1134, %v1197
        %v1200 = vsel %vm1198, 1, 0
        %v1201 = vsel %vm1199, 1, 0
        %v1202 = vcvt.s32.f32 %v1200
        %v1203 = vcvt.s32.f32 %v1201
        %v1204 = vmul.f32 %v752, %v1202
        %v1205 = vmul.f32 %v757, %v1203
        %v1206 = vmul.f32 %v762, %v1202
        %v1207 = vmul.f32 %v767, %v1203
        %v1208 = vsel %vm672, %v1204, 0.0
        %v1209 = vsel %vm672, %v1205, 0.0
        %v1210 = vadd.f32 %v1208, %v1209
        %v1211 = vrot.slane %v1210, 4
        %v1212 = vadd.f32 %v1210, %v1211
        %v1213 = vrot.slane %v1212, 2
        %v1214 = vadd.f32 %v1212, %v1213
        %v1215 = vrot.slane %v1214, 1
        %v1216 = vadd.f32 %v1214, %v1215
        %v1217 = vsel %vm672, %v1206, 0.0
        %v1218 = vsel %vm672, %v1207, 0.0
        %v1219 = vadd.f32 %v1217, %v1218
        %v1220 = vrot.slane %v1219, 4
        %v1221 = vadd.f32 %v1219, %v1220
        %v1222 = vrot.slane %v1221, 2
        %v1223 = vadd.f32 %v1221, %v1222
        %v1224 = vrot.slane %v1223, 1
        %v1225 = vadd.f32 %v1223, %v1224
        %v1226 = vmul.f32 %v1188, %v1202
        %v1227 = vmul.f32 %v1189, %v1203
        %v1228 = vmul.f32 %v1190, %v1202
        %v1229 = vmul.f32 %v1191, %v1203
        %v1230 = vsel %vm1147, %v1226, 0.0
        %v1231 = vsel %vm1147, %v1227, 0.0
        %v1232 = vadd.f32 %v1230, %v1231
        %v1233 = vrot.slane %v1232, 4
        %v1234 = vadd.f32 %v1232, %v1233
        %v1235 = vrot.slane %v1234, 2
        %v1236 = vadd.f32 %v1234, %v1235
        %v1237 = vrot.slane %v1236, 1
        %v1238 = vadd.f32 %v1236, %v1237
        %v1239 = vsel %vm1147, %v1228, 0.0
        %v1240 = vsel %vm1147, %v1229, 0.0
        %v1241 = vadd.f32 %v1239, %v1240
        %v1242 = vrot.slane %v1241, 4
        %v1243 = vadd.f32 %v1241, %v1242
        %v1244 = vrot.slane %v1243, 2
        %v1245 = vadd.f32 %v1243, %v1244
        %v1246 = vrot.slane %v1245, 1
        %v1247 = vadd.f32 %v1245, %v1246
        %1248 = vrot.lane.b32.xlu0 %v932, 112
        %v1249 = vpop.permute.xlu0 %1248
        %1250 = vrot.lane.b32.xlu0 %v937, 112
        %v1251 = vpop.permute.xlu0 %1250
        %v1255 = vsel %vm1147, %v1238, 0
        %1257 = vmatprep.subr.mxu0 0.0
        %1258 = vmatpush1.msra.mxu0 %v1249
        %1259 = vmatprep.subr.mxu0 0.0
        %1260 = vmatpush1.msra.mxu0 %v1251
        %1261 = vmatprep.subr.mxu0 0.0
        %1262 = vmatpush1.msra.mxu0 0.0
        %1263 = vmatprep.subr.mxu0 0.0
        %1264 = vmatpush1.msra.mxu0 0.0
        %1265 = vmatprep.subr.mxu0 0.0
        %1266 = vmatpush1.msra.mxu0 0.0
        %1267 = vmatprep.subr.mxu0 0.0
        %1268 = vmatpush1.msra.mxu0 0.0
        %1269 = vmatprep.subr.mxu0 0.0
        %1270 = vmatpush1.msra.mxu0 0.0
        %1271 = vmatprep.subr.mxu0 0.0
        %1272 = vmatpush1.msra.mxu0 0.0
        %1273 = vmatprep.subr.mxu0 0.0
        %1274 = vmatpush1.msra.mxu0 0.0
        %1275 = vmatprep.subr.mxu0 0.0
        %1276 = vmatpush1.msra.mxu0 0.0
        %1277 = vmatprep.subr.mxu0 0.0
        %1278 = vmatpush1.msra.mxu0 0.0
        %1279 = vmatprep.subr.mxu0 0.0
        %1280 = vmatpush1.msra.mxu0 0.0
        %1281 = vmatprep.subr.mxu0 0.0
        %1282 = vmatpush1.msra.mxu0 0.0
        %1283 = vmatprep.subr.mxu0 0.0
        %1284 = vmatpush1.msra.mxu0 0.0
        %1285 = vmatprep.subr.mxu0 0.0
        %1286 = vmatpush1.msra.mxu0 0.0
        %1287 = vmatprep.subr.mxu0 0.0
        %1288 = vmatpush1.msra.mxu0 0.0
        %1289 = vmatprep.subr.mxu0 0.0
        %1290 = vmatpush1.msra.mxu0 0.0
        %1291 = vmatprep.subr.mxu0 0.0
        %1292 = vmatpush1.msra.mxu0 0.0
        %1293 = vmatprep.subr.mxu0 0.0
        %1294 = vmatpush1.msra.mxu0 0.0
        %1295 = vmatprep.subr.mxu0 0.0
        %1296 = vmatpush1.msra.mxu0 0.0
        %1297 = vmatprep.subr.mxu0 0.0
        %1298 = vmatpush1.msra.mxu0 0.0
        %1299 = vmatprep.subr.mxu0 0.0
        %1300 = vmatpush1.msra.mxu0 0.0
        %1301 = vmatprep.subr.mxu0 0.0
        %1302 = vmatpush1.msra.mxu0 0.0
        %1303 = vmatprep.subr.mxu0 0.0
        %1304 = vmatpush1.msra.mxu0 0.0
        %1305 = vmatprep.subr.mxu0 0.0
        %1306 = vmatpush1.msra.mxu0 0.0
        %1307 = vmatprep.subr.mxu0 0.0
        %1308 = vmatpush1.msra.mxu0 0.0
        %1309 = vmatprep.subr.mxu0 0.0
        %1310 = vmatpush1.msra.mxu0 0.0
        %1311 = vmatprep.subr.mxu0 0.0
        %1312 = vmatpush1.msra.mxu0 0.0
        %1313 = vmatprep.subr.mxu0 0.0
        %1314 = vmatpush1.msra.mxu0 0.0
        %1315 = vmatprep.subr.mxu0 0.0
        %1316 = vmatpush1.msra.mxu0 0.0
        %1317 = vmatprep.subr.mxu0 0.0
        %1318 = vmatpush1.msra.mxu0 0.0
        %1319 = vmatprep.subr.mxu0 0.0
        %1320 = vmatpush1.msra.mxu0 0.0
        %1321 = vmatprep.mubr.f32.mxu0 0.0
        %1322 = vmatmul.mubr.f32.gmra.mrb[0].mxu0 %v1255
        %v1323 = vpop.f32.mrb[0].mxu0
        %v1324 = vadd.f32 0.0, %v1323
        %v1325 = vpop.f32.mrb[0].mxu0
        %1326 = vdwg.mxu0
        %1327 = vrot.lane.b32.xlu0 %v942, 112
        %v1328 = vpop.permute.xlu0 %1327
        %1329 = vrot.lane.b32.xlu0 %v947, 112
        %v1330 = vpop.permute.xlu0 %1329
        %v1334 = vsel %vm1147, %v1247, 0
        %1336 = vmatprep.subr.mxu0 0.0
        %1337 = vmatpush1.msra.mxu0 %v1328
        %1338 = vmatprep.subr.mxu0 0.0
        %1339 = vmatpush1.msra.mxu0 %v1330
        %1340 = vmatprep.subr.mxu0 0.0
        %1341 = vmatpush1.msra.mxu0 0.0
        %1342 = vmatprep.subr.mxu0 0.0
        %1343 = vmatpush1.msra.mxu0 0.0
        %1344 = vmatprep.subr.mxu0 0.0
        %1345 = vmatpush1.msra.mxu0 0.0
        %1346 = vmatprep.subr.mxu0 0.0
        %1347 = vmatpush1.msra.mxu0 0.0
        %1348 = vmatprep.subr.mxu0 0.0
        %1349 = vmatpush1.msra.mxu0 0.0
        %1350 = vmatprep.subr.mxu0 0.0
        %1351 = vmatpush1.msra.mxu0 0.0
        %1352 = vmatprep.subr.mxu0 0.0
        %1353 = vmatpush1.msra.mxu0 0.0
        %1354 = vmatprep.subr.mxu0 0.0
        %1355 = vmatpush1.msra.mxu0 0.0
        %1356 = vmatprep.subr.mxu0 0.0
        %1357 = vmatpush1.msra.mxu0 0.0
        %1358 = vmatprep.subr.mxu0 0.0
        %1359 = vmatpush1.msra.mxu0 0.0
        %1360 = vmatprep.subr.mxu0 0.0
        %1361 = vmatpush1.msra.mxu0 0.0
        %1362 = vmatprep.subr.mxu0 0.0
        %1363 = vmatpush1.msra.mxu0 0.0
        %1364 = vmatprep.subr.mxu0 0.0
        %1365 = vmatpush1.msra.mxu0 0.0
        %1366 = vmatprep.subr.mxu0 0.0
        %1367 = vmatpush1.msra.mxu0 0.0
        %1368 = vmatprep.subr.mxu0 0.0
        %1369 = vmatpush1.msra.mxu0 0.0
        %1370 = vmatprep.subr.mxu0 0.0
        %1371 = vmatpush1.msra.mxu0 0.0
        %1372 = vmatprep.subr.mxu0 0.0
        %1373 = vmatpush1.msra.mxu0 0.0
        %1374 = vmatprep.subr.mxu0 0.0
        %1375 = vmatpush1.msra.mxu0 0.0
        %1376 = vmatprep.subr.mxu0 0.0
        %1377 = vmatpush1.msra.mxu0 0.0
        %1378 = vmatprep.subr.mxu0 0.0
        %1379 = vmatpush1.msra.mxu0 0.0
        %1380 = vmatprep.subr.mxu0 0.0
        %1381 = vmatpush1.msra.mxu0 0.0
        %1382 = vmatprep.subr.mxu0 0.0
        %1383 = vmatpush1.msra.mxu0 0.0
        %1384 = vmatprep.subr.mxu0 0.0
        %1385 = vmatpush1.msra.mxu0 0.0
        %1386 = vmatprep.subr.mxu0 0.0
        %1387 = vmatpush1.msra.mxu0 0.0
        %1388 = vmatprep.subr.mxu0 0.0
        %1389 = vmatpush1.msra.mxu0 0.0
        %1390 = vmatprep.subr.mxu0 0.0
        %1391 = vmatpush1.msra.mxu0 0.0
        %1392 = vmatprep.subr.mxu0 0.0
        %1393 = vmatpush1.msra.mxu0 0.0
        %1394 = vmatprep.subr.mxu0 0.0
        %1395 = vmatpush1.msra.mxu0 0.0
        %1396 = vmatprep.subr.mxu0 0.0
        %1397 = vmatpush1.msra.mxu0 0.0
        %1398 = vmatprep.subr.mxu0 0.0
        %1399 = vmatpush1.msra.mxu0 0.0
        %1400 = vmatprep.mubr.f32.mxu0 0.0
        %1401 = vmatmul.mubr.f32.gmra.mrb[0].mxu0 %v1334
        %v1402 = vpop.f32.mrb[0].mxu0
        %v1403 = vadd.f32 0.0, %v1402
        %v1404 = vpop.f32.mrb[0].mxu0
        %1405 = vdwg.mxu0
        %v1406 = vld [vmem:[%s7] sm:$0xff]
        %v1407 = vld [vmem:[%s8] sm:$0x1]
        %v1409 = vlaneseq
        %v1410 = vshrl.u32 %v1409, 7
        %v1411 = vsub.s32 0, %v1410
        %v1412 = vrot.slane %v1407, %v1411
        %v1416 = vrot.slane %v1403, 7
        %vm1417 = vcmask 1041409
        %v1418 = vsel %vm1417, %v1416, %v1324
        %v1419 = vsel %vm672, %v1418, 0
        %1421 = vmatprep.subr.mxu0 0.0
        %1422 = vmatpush1.msra.mxu0 %v1406
        %1423 = vmatprep.subr.mxu0 0.0
        %1424 = vmatpush1.msra.mxu0 0.0
        %1425 = vmatprep.subr.mxu0 0.0
        %1426 = vmatpush1.msra.mxu0 0.0
        %1427 = vmatprep.subr.mxu0 0.0
        %1428 = vmatpush1.msra.mxu0 0.0
        %1429 = vmatprep.subr.mxu0 0.0
        %1430 = vmatpush1.msra.mxu0 0.0
        %1431 = vmatprep.subr.mxu0 0.0
        %1432 = vmatpush1.msra.mxu0 0.0
        %1433 = vmatprep.subr.mxu0 0.0
        %1434 = vmatpush1.msra.mxu0 0.0
        %1435 = vmatprep.subr.mxu0 0.0
        %1436 = vmatpush1.msra.mxu0 0.0
        %1437 = vmatprep.subr.mxu0 0.0
        %1438 = vmatpush1.msra.mxu0 0.0
        %1439 = vmatprep.subr.mxu0 0.0
        %1440 = vmatpush1.msra.mxu0 0.0
        %1441 = vmatprep.subr.mxu0 0.0
        %1442 = vmatpush1.msra.mxu0 0.0
        %1443 = vmatprep.subr.mxu0 0.0
        %1444 = vmatpush1.msra.mxu0 0.0
        %1445 = vmatprep.subr.mxu0 0.0
        %1446 = vmatpush1.msra.mxu0 0.0
        %1447 = vmatprep.subr.mxu0 0.0
        %1448 = vmatpush1.msra.mxu0 0.0
        %1449 = vmatprep.subr.mxu0 0.0
        %1450 = vmatpush1.msra.mxu0 0.0
        %1451 = vmatprep.subr.mxu0 0.0
        %1452 = vmatpush1.msra.mxu0 0.0
        %1453 = vmatprep.subr.mxu0 0.0
        %1454 = vmatpush1.msra.mxu0 0.0
        %1455 = vmatprep.subr.mxu0 0.0
        %1456 = vmatpush1.msra.mxu0 0.0
        %1457 = vmatprep.subr.mxu0 0.0
        %1458 = vmatpush1.msra.mxu0 0.0
        %1459 = vmatprep.subr.mxu0 0.0
        %1460 = vmatpush1.msra.mxu0 0.0
        %1461 = vmatprep.subr.mxu0 0.0
        %1462 = vmatpush1.msra.mxu0 0.0
        %1463 = vmatprep.subr.mxu0 0.0
        %1464 = vmatpush1.msra.mxu0 0.0
        %1465 = vmatprep.subr.mxu0 0.0
        %1466 = vmatpush1.msra.mxu0 0.0
        %1467 = vmatprep.subr.mxu0 0.0
        %1468 = vmatpush1.msra.mxu0 0.0
        %1469 = vmatprep.subr.mxu0 0.0
        %1470 = vmatpush1.msra.mxu0 0.0
        %1471 = vmatprep.subr.mxu0 0.0
        %1472 = vmatpush1.msra.mxu0 0.0
        %1473 = vmatprep.subr.mxu0 0.0
        %1474 = vmatpush1.msra.mxu0 0.0
        %1475 = vmatprep.subr.mxu0 0.0
        %1476 = vmatpush1.msra.mxu0 0.0
        %1477 = vmatprep.subr.mxu0 0.0
        %1478 = vmatpush1.msra.mxu0 0.0
        %1479 = vmatprep.subr.mxu0 0.0
        %1480 = vmatpush1.msra.mxu0 0.0
        %1481 = vmatprep.subr.mxu0 0.0
        %1482 = vmatpush1.msra.mxu0 0.0
        %1483 = vmatprep.subr.mxu0 0.0
        %1484 = vmatpush1.msra.mxu0 0.0
        %1485 = vmatprep.mubr.f32.mxu0 0.0
        %1486 = vmatmul.mubr.f32.gmra.mrb[0].mxu0 %v1419
        %v1487 = vpop.f32.mrb[0].mxu0
        %v1488 = vadd.f32 %v1412, %v1487
        %v1489 = vpop.f32.mrb[0].mxu0
        %1490 = vdwg.mxu0
        %v1492 = vrot.slane %v1488, 1
        %v1495 = vadd.f32 %v1216, %v1488
        %v1496 = vadd.f32 %v1225, %v1492
        %v1499 = vrot.slane %v1496, 7
        %v1500 = vsel %vm1417, %v1499, %v1495
        %vm1502 = vcmask 58368
        %v1503 = vsel %vm1502, %v1500, 0.0
        %1504 = vadd.xlane.f32.xlu0 %v1503
        %v1505 = vpop.xlane.xlu0 %1504
        %v1506 = vmul.f32 %v1505, %v782
        %v1508 = vrot.slane %v1506, 1
        %v1511 = vsub.f32 %v1495, %v1506
        %v1512 = vsub.f32 %v1496, %v1508
        %v1513 = vmul.f32 %v1511, %v1511
        %v1514 = vmul.f32 %v1512, %v1512
        %v1517 = vrot.slane %v1514, 7
        %v1518 = vsel %vm1417, %v1517, %v1513
        %v1520 = vsel %vm1502, %v1518, 0.0
        %1521 = vadd.xlane.f32.xlu0 %v1520
        %v1522 = vpop.xlane.xlu0 %1521
        %v1523 = vmul.f32 %v1522, %v782
        %v1524 = vadd.f32 %v1523, 1e-05
        %v1525 = vrsqrt.pop %v1524
        %v1527 = vrot.slane %v1525, 1
        %v1530 = vmul.f32 %v1511, %v1525
        %v1531 = vmul.f32 %v1512, %v1527
        %v1532 = vld [vmem:[%s9] sm:$0x1]
        %v1534 = vlaneseq
        %v1535 = vshrl.u32 %v1534, 7
        %v1536 = vsub.s32 0, %v1535
        %v1537 = vrot.slane %v1532, %v1536
        %v1539 = vmul.f32 %v1530, %v1537
        %v1540 = vmul.f32 %v1531, %v1537
        %v1541 = vld [vmem:[%s10] sm:$0x1]
        %v1543 = vlaneseq
        %v1544 = vshrl.u32 %v1543, 7
        %v1545 = vsub.s32 0, %v1544
        %v1546 = vrot.slane %v1541, %v1545
        %v1548 = vadd.f32 %v1539, %v1546
        %v1549 = vadd.f32 %v1540, %v1546
        %v1550 = vld [vmem:[%s11] sm:$0xff]
        %v1551 = vld [vmem:[%s12] sm:$0x1]
        %v1553 = vlaneseq
        %v1554 = vshrl.u32 %v1553, 7
        %v1555 = vsub.s32 0, %v1554
        %v1556 = vrot.slane %v1551, %v1555
        %v1560 = vrot.slane %v1549, 7
        %v1561 = vsel %vm1417, %v1560, %v1548
        %v1562 = vsel %vm672, %v1561, 0
        %1564 = vmatprep.subr.mxu0 0.0
        %1565 = vmatpush1.msra.mxu0 %v1550
        %1566 = vmatprep.subr.mxu0 0.0
        %1567 = vmatpush1.msra.mxu0 0.0
        %1568 = vmatprep.subr.mxu0 0.0
        %1569 = vmatpush1.msra.mxu0 0.0
        %1570 = vmatprep.subr.mxu0 0.0
        %1571 = vmatpush1.msra.mxu0 0.0
        %1572 = vmatprep.subr.mxu0 0.0
        %1573 = vmatpush1.msra.mxu0 0.0
        %1574 = vmatprep.subr.mxu0 0.0
        %1575 = vmatpush1.msra.mxu0 0.0
        %1576 = vmatprep.subr.mxu0 0.0
        %1577 = vmatpush1.msra.mxu0 0.0
        %1578 = vmatprep.subr.mxu0 0.0
        %1579 = vmatpush1.msra.mxu0 0.0
        %1580 = vmatprep.subr.mxu0 0.0
        %1581 = vmatpush1.msra.mxu0 0.0
        %1582 = vmatprep.subr.mxu0 0.0
        %1583 = vmatpush1.msra.mxu0 0.0
        %1584 = vmatprep.subr.mxu0 0.0
        %1585 = vmatpush1.msra.mxu0 0.0
        %1586 = vmatprep.subr.mxu0 0.0
        %1587 = vmatpush1.msra.mxu0 0.0
        %1588 = vmatprep.subr.mxu0 0.0
        %1589 = vmatpush1.msra.mxu0 0.0
        %1590 = vmatprep.subr.mxu0 0.0
        %1591 = vmatpush1.msra.mxu0 0.0
        %1592 = vmatprep.subr.mxu0 0.0
        %1593 = vmatpush1.msra.mxu0 0.0
        %1594 = vmatprep.subr.mxu0 0.0
        %1595 = vmatpush1.msra.mxu0 0.0
        %1596 = vmatprep.subr.mxu0 0.0
        %1597 = vmatpush1.msra.mxu0 0.0
        %1598 = vmatprep.subr.mxu0 0.0
        %1599 = vmatpush1.msra.mxu0 0.0
        %1600 = vmatprep.subr.mxu0 0.0
        %1601 = vmatpush1.msra.mxu0 0.0
        %1602 = vmatprep.subr.mxu0 0.0
        %1603 = vmatpush1.msra.mxu0 0.0
        %1604 = vmatprep.subr.mxu0 0.0
        %1605 = vmatpush1.msra.mxu0 0.0
        %1606 = vmatprep.subr.mxu0 0.0
        %1607 = vmatpush1.msra.mxu0 0.0
        %1608 = vmatprep.subr.mxu0 0.0
        %1609 = vmatpush1.msra.mxu0 0.0
        %1610 = vmatprep.subr.mxu0 0.0
        %1611 = vmatpush1.msra.mxu0 0.0
        %1612 = vmatprep.subr.mxu0 0.0
        %1613 = vmatpush1.msra.mxu0 0.0
        %1614 = vmatprep.subr.mxu0 0.0
        %1615 = vmatpush1.msra.mxu0 0.0
        %1616 = vmatprep.subr.mxu0 0.0
        %1617 = vmatpush1.msra.mxu0 0.0
        %1618 = vmatprep.subr.mxu0 0.0
        %1619 = vmatpush1.msra.mxu0 0.0
        %1620 = vmatprep.subr.mxu0 0.0
        %1621 = vmatpush1.msra.mxu0 0.0
        %1622 = vmatprep.subr.mxu0 0.0
        %1623 = vmatpush1.msra.mxu0 0.0
        %1624 = vmatprep.subr.mxu0 0.0
        %1625 = vmatpush1.msra.mxu0 0.0
        %1626 = vmatprep.subr.mxu0 0.0
        %1627 = vmatpush1.msra.mxu0 0.0
        %1628 = vmatprep.mubr.f32.mxu0 0.0
        %1629 = vmatmul.mubr.f32.gmra.mrb[0].mxu0 %v1562
        %v1630 = vpop.f32.mrb[0].mxu0
        %v1631 = vadd.f32 %v1556, %v1630
        %v1632 = vpop.f32.mrb[0].mxu0
        %1633 = vdwg.mxu0
        %v1634 = vmul.f32 %v1631, 0.5
        %v1635 = vmul.f32 %v1631, 0.044715
        %v1636 = vmul.f32 %v1635, %v1631
        %v1637 = vmul.f32 %v1636, %v1631
        %v1638 = vadd.f32 %v1631, %v1637
        %v1639 = vmul.f32 %v1638, 0.7978846
        %v1640 = vtanh.pop %v1639
        %v1641 = vadd.f32 %v1640, 1.0
        %v1642 = vmul.f32 %v1634, %v1641
        %v1643 = vld [vmem:[%s13] sm:$0xff]
        %v1644 = vld [vmem:[%s13 + $0x8] sm:$0xff]
        %v1645 = vld [vmem:[%s13 + $0x10] sm:$0xff]
        %v1646 = vld [vmem:[%s13 + $0x18] sm:$0xff]
        %v1647 = vld [vmem:[%s14] sm:$0x1]
        %v1649 = vlaneseq
        %v1650 = vshrl.u32 %v1649, 7
        %v1651 = vsub.s32 0, %v1650
        %v1652 = vrot.slane %v1647, %v1651
        %vm1654 = vcmask 261120
        %v1656 = vsel %vm1654, %v1642, 0
        %1658 = vmatprep.subr.mxu0 0.0
        %1659 = vmatpush1.msra.mxu0 %v1643
        %1660 = vmatprep.subr.mxu0 0.0
        %1661 = vmatpush1.msra.mxu0 %v1644
        %1662 = vmatprep.subr.mxu0 0.0
        %1663 = vmatpush1.msra.mxu0 %v1645
        %1664 = vmatprep.subr.mxu0 0.0
        %1665 = vmatpush1.msra.mxu0 %v1646
        %1666 = vmatprep.subr.mxu0 0.0
        %1667 = vmatpush1.msra.mxu0 0.0
        %1668 = vmatprep.subr.mxu0 0.0
        %1669 = vmatpush1.msra.mxu0 0.0
        %1670 = vmatprep.subr.mxu0 0.0
        %1671 = vmatpush1.msra.mxu0 0.0
        %1672 = vmatprep.subr.mxu0 0.0
        %1673 = vmatpush1.msra.mxu0 0.0
        %1674 = vmatprep.subr.mxu0 0.0
        %1675 = vmatpush1.msra.mxu0 0.0
        %1676 = vmatprep.subr.mxu0 0.0
        %1677 = vmatpush1.msra.mxu0 0.0
        %1678 = vmatprep.subr.mxu0 0.0
        %1679 = vmatpush1.msra.mxu0 0.0
        %1680 = vmatprep.subr.mxu0 0.0
        %1681 = vmatpush1.msra.mxu0 0.0
        %1682 = vmatprep.subr.mxu0 0.0
        %1683 = vmatpush1.msra.mxu0 0.0
        %1684 = vmatprep.subr.mxu0 0.0
        %1685 = vmatpush1.msra.mxu0 0.0
        %1686 = vmatprep.subr.mxu0 0.0
        %1687 = vmatpush1.msra.mxu0 0.0
        %1688 = vmatprep.subr.mxu0 0.0
        %1689 = vmatpush1.msra.mxu0 0.0
        %1690 = vmatprep.subr.mxu0 0.0
        %1691 = vmatpush1.msra.mxu0 0.0
        %1692 = vmatprep.subr.mxu0 0.0
        %1693 = vmatpush1.msra.mxu0 0.0
        %1694 = vmatprep.subr.mxu0 0.0
        %1695 = vmatpush1.msra.mxu0 0.0
        %1696 = vmatprep.subr.mxu0 0.0
        %1697 = vmatpush1.msra.mxu0 0.0
        %1698 = vmatprep.subr.mxu0 0.0
        %1699 = vmatpush1.msra.mxu0 0.0
        %1700 = vmatprep.subr.mxu0 0.0
        %1701 = vmatpush1.msra.mxu0 0.0
        %1702 = vmatprep.subr.mxu0 0.0
        %1703 = vmatpush1.msra.mxu0 0.0
        %1704 = vmatprep.subr.mxu0 0.0
        %1705 = vmatpush1.msra.mxu0 0.0
        %1706 = vmatprep.subr.mxu0 0.0
        %1707 = vmatpush1.msra.mxu0 0.0
        %1708 = vmatprep.subr.mxu0 0.0
        %1709 = vmatpush1.msra.mxu0 0.0
        %1710 = vmatprep.subr.mxu0 0.0
        %1711 = vmatpush1.msra.mxu0 0.0
        %1712 = vmatprep.subr.mxu0 0.0
        %1713 = vmatpush1.msra.mxu0 0.0
        %1714 = vmatprep.subr.mxu0 0.0
        %1715 = vmatpush1.msra.mxu0 0.0
        %1716 = vmatprep.subr.mxu0 0.0
        %1717 = vmatpush1.msra.mxu0 0.0
        %1718 = vmatprep.subr.mxu0 0.0
        %1719 = vmatpush1.msra.mxu0 0.0
        %1720 = vmatprep.subr.mxu0 0.0
        %1721 = vmatpush1.msra.mxu0 0.0
        %1722 = vmatprep.mubr.f32.mxu0 0.0
        %1723 = vmatmul.mubr.f32.gmra.mrb[0].mxu0 %v1656
        %v1724 = vpop.f32.mrb[0].mxu0
        %v1725 = vadd.f32 %v1652, %v1724
        %v1726 = vpop.f32.mrb[0].mxu0
        %1727 = vdwg.mxu0
        %v1729 = vrot.slane %v1725, 1
        %v1732 = vadd.f32 %v1495, %v1725
        %v1733 = vadd.f32 %v1496, %v1729
        %v1736 = vrot.slane %v1733, 7
        %v1737 = vsel %vm1417, %v1736, %v1732
        %v1739 = vsel %vm1502, %v1737, 0.0
        %1740 = vadd.xlane.f32.xlu0 %v1739
        %v1741 = vpop.xlane.xlu0 %1740
        %v1742 = vmul.f32 %v1741, %v782
        %v1744 = vrot.slane %v1742, 1
        %v1747 = vsub.f32 %v1732, %v1742
        %v1748 = vsub.f32 %v1733, %v1744
        %v1749 = vmul.f32 %v1747, %v1747
        %v1750 = vmul.f32 %v1748, %v1748
        %v1753 = vrot.slane %v1750, 7
        %v1754 = vsel %vm1417, %v1753, %v1749
        %v1756 = vsel %vm1502, %v1754, 0.0
        %1757 = vadd.xlane.f32.xlu0 %v1756
        %v1758 = vpop.xlane.xlu0 %1757
        %v1759 = vmul.f32 %v1758, %v782
        %v1760 = vadd.f32 %v1759, 1e-05
        %v1761 = vrsqrt.pop %v1760
        %v1763 = vrot.slane %v1761, 1
        %v1766 = vmul.f32 %v1747, %v1761
        %v1767 = vmul.f32 %v1748, %v1763
        %v1768 = vld [vmem:[%s15] sm:$0x1]
        %v1770 = vlaneseq
        %v1771 = vshrl.u32 %v1770, 7
        %v1772 = vsub.s32 0, %v1771
        %v1773 = vrot.slane %v1768, %v1772
        %v1775 = vmul.f32 %v1766, %v1773
        %v1776 = vmul.f32 %v1767, %v1773
        %v1777 = vld [vmem:[%s16] sm:$0x1]
        %v1779 = vlaneseq
        %v1780 = vshrl.u32 %v1779, 7
        %v1781 = vsub.s32 0, %v1780
        %v1782 = vrot.slane %v1777, %v1781
        %v1784 = vadd.f32 %v1775, %v1782
        %v1785 = vadd.f32 %v1776, %v1782
        %v1786 = vld [vmem:[%s17] sm:$0xff]
        %v1787 = vld [vmem:[%s18] sm:$0x1]
        %v1789 = vlaneseq
        %v1790 = vshrl.u32 %v1789, 7
        %v1791 = vsub.s32 0, %v1790
        %v1792 = vrot.slane %v1787, %v1791
        %v1796 = vrot.slane %v1785, 7
        %v1797 = vsel %vm1417, %v1796, %v1784
        %v1798 = vsel %vm672, %v1797, 0
        %1800 = vmatprep.subr.mxu0 0.0
        %1801 = vmatpush1.msra.mxu0 %v1786
        %1802 = vmatprep.subr.mxu0 0.0
        %1803 = vmatpush1.msra.mxu0 0.0
        %1804 = vmatprep.subr.mxu0 0.0
        %1805 = vmatpush1.msra.mxu0 0.0
        %1806 = vmatprep.subr.mxu0 0.0
        %1807 = vmatpush1.msra.mxu0 0.0
        %1808 = vmatprep.subr.mxu0 0.0
        %1809 = vmatpush1.msra.mxu0 0.0
        %1810 = vmatprep.subr.mxu0 0.0
        %1811 = vmatpush1.msra.mxu0 0.0
        %1812 = vmatprep.subr.mxu0 0.0
        %1813 = vmatpush1.msra.mxu0 0.0
        %1814 = vmatprep.subr.mxu0 0.0
        %1815 = vmatpush1.msra.mxu0 0.0
        %1816 = vmatprep.subr.mxu0 0.0
        %1817 = vmatpush1.msra.mxu0 0.0
        %1818 = vmatprep.subr.mxu0 0.0
        %1819 = vmatpush1.msra.mxu0 0.0
        %1820 = vmatprep.subr.mxu0 0.0
        %1821 = vmatpush1.msra.mxu0 0.0
        %1822 = vmatprep.subr.mxu0 0.0
        %1823 = vmatpush1.msra.mxu0 0.0
        %1824 = vmatprep.subr.mxu0 0.0
        %1825 = vmatpush1.msra.mxu0 0.0
        %1826 = vmatprep.subr.mxu0 0.0
        %1827 = vmatpush1.msra.mxu0 0.0
        %1828 = vmatprep.subr.mxu0 0.0
        %1829 = vmatpush1.msra.mxu0 0.0
        %1830 = vmatprep.subr.mxu0 0.0
        %1831 = vmatpush1.msra.mxu0 0.0
        %1832 = vmatprep.subr.mxu0 0.0
        %1833 = vmatpush1.msra.mxu0 0.0
        %1834 = vmatprep.subr.mxu0 0.0
        %1835 = vmatpush1.msra.mxu0 0.0
        %1836 = vmatprep.subr.mxu0 0.0
        %1837 = vmatpush1.msra.mxu0 0.0
        %1838 = vmatprep.subr.mxu0 0.0
        %1839 = vmatpush1.msra.mxu0 0.0
        %1840 = vmatprep.subr.mxu0 0.0
        %1841 = vmatpush1.msra.mxu0 0.0
        %1842 = vmatprep.subr.mxu0 0.0
        %1843 = vmatpush1.msra.mxu0 0.0
        %1844 = vmatprep.subr.mxu0 0.0
        %1845 = vmatpush1.msra.mxu0 0.0
        %1846 = vmatprep.subr.mxu0 0.0
        %1847 = vmatpush1.msra.mxu0 0.0
        %1848 = vmatprep.subr.mxu0 0.0
        %1849 = vmatpush1.msra.mxu0 0.0
        %1850 = vmatprep.subr.mxu0 0.0
        %1851 = vmatpush1.msra.mxu0 0.0
        %1852 = vmatprep.subr.mxu0 0.0
        %1853 = vmatpush1.msra.mxu0 0.0
        %1854 = vmatprep.subr.mxu0 0.0
        %1855 = vmatpush1.msra.mxu0 0.0
        %1856 = vmatprep.subr.mxu0 0.0
        %1857 = vmatpush1.msra.mxu0 0.0
        %1858 = vmatprep.subr.mxu0 0.0
        %1859 = vmatpush1.msra.mxu0 0.0
        %1860 = vmatprep.subr.mxu0 0.0
        %1861 = vmatpush1.msra.mxu0 0.0
        %1862 = vmatprep.subr.mxu0 0.0
        %1863 = vmatpush1.msra.mxu0 0.0
        %1864 = vmatprep.mubr.f32.mxu0 0.0
        %1865 = vmatmul.mubr.f32.gmra.mrb[0].mxu0 %v1798
        %v1866 = vpop.f32.mrb[0].mxu0
        %v1867 = vadd.f32 %v1792, %v1866
        %v1868 = vpop.f32.mrb[0].mxu0
        %1869 = vdwg.mxu0
        %1870 = vst [vmem:[%s638] sm:$0x3] %v1867
        %vm1871 = vcmp.gt.f32.partialorder %v1867, 0.0
        %v1872 = vsel %vm1871, 1, 0
        %v1873 = vcvt.s32.f32 %v1872
        %v1874 = vld [vmem:[%s19] sm:$0xff]
        %v1875 = vld [vmem:[%s19 + $0x8] sm:$0xff]
        %v1876 = vld [vmem:[%s19 + $0x10] sm:$0xff]
        %v1877 = vld [vmem:[%s19 + $0x18] sm:$0xff]
        %v1878 = vld [vmem:[%s19 + $0x20] sm:$0xff]
        %v1879 = vld [vmem:[%s19 + $0x28] sm:$0xff]
        %v1880 = vld [vmem:[%s19 + $0x30] sm:$0xff]
        %v1881 = vld [vmem:[%s19 + $0x38] sm:$0xff]
        %v1882 = vld [vmem:[%s19 + $0x40] sm:$0xff]
        %v1883 = vld [vmem:[%s19 + $0x48] sm:$0xff]
        %v1884 = vld [vmem:[%s19 + $0x50] sm:$0xff]
        %v1885 = vld [vmem:[%s19 + $0x58] sm:$0xff]
        %v1886 = vld [vmem:[%s19 + $0x60] sm:$0xff]
        %v1887 = vld [vmem:[%s19 + $0x68] sm:$0xff]
        %v1888 = vld [vmem:[%s19 + $0x70] sm:$0xff]
        %v1889 = vld [vmem:[%s19 + $0x78] sm:$0xff]
        %1890 = vmatprep.subr.mxu0 0.0
        %1891 = vmatpush1.msra.mxu0 %v1874
        %1892 = vmatprep.subr.mxu0 0.0
        %1893 = vmatpush1.msra.mxu0 %v1875
        %1894 = vmatprep.subr.mxu0 0.0
        %1895 = vmatpush1.msra.mxu0 %v1876
        %1896 = vmatprep.subr.mxu0 0.0
        %1897 = vmatpush1.msra.mxu0 %v1877
        %1898 = vmatprep.subr.mxu0 0.0
        %1899 = vmatpush1.msra.mxu0 %v1878
        %1900 = vmatprep.subr.mxu0 0.0
        %1901 = vmatpush1.msra.mxu0 %v1879
        %1902 = vmatprep.subr.mxu0 0.0
        %1903 = vmatpush1.msra.mxu0 %v1880
        %1904 = vmatprep.subr.mxu0 0.0
        %1905 = vmatpush1.msra.mxu0 %v1881
        %1906 = vmatprep.subr.mxu0 0.0
        %1907 = vmatpush1.msra.mxu0 %v1882
        %1908 = vmatprep.subr.mxu0 0.0
        %1909 = vmatpush1.msra.mxu0 %v1883
        %1910 = vmatprep.subr.mxu0 0.0
        %1911 = vmatpush1.msra.mxu0 %v1884
        %1912 = vmatprep.subr.mxu0 0.0
        %1913 = vmatpush1.msra.mxu0 %v1885
        %1914 = vmatprep.subr.mxu0 0.0
        %1915 = vmatpush1.msra.mxu0 %v1886
        %1916 = vmatprep.subr.mxu0 0.0
        %1917 = vmatpush1.msra.mxu0 %v1887
        %1918 = vmatprep.subr.mxu0 0.0
        %1919 = vmatpush1.msra.mxu0 %v1888
        %1920 = vmatprep.subr.mxu0 0.0
        %1921 = vmatpush1.msra.mxu0 %v1889
        %1922 = vmatprep.subr.mxu0 0.0
        %1923 = vmatpush1.msra.mxu0 0.0
        %1924 = vmatprep.subr.mxu0 0.0
        %1925 = vmatpush1.msra.mxu0 0.0
        %1926 = vmatprep.subr.mxu0 0.0
        %1927 = vmatpush1.msra.mxu0 0.0
        %1928 = vmatprep.subr.mxu0 0.0
        %1929 = vmatpush1.msra.mxu0 0.0
        %1930 = vmatprep.subr.mxu0 0.0
        %1931 = vmatpush1.msra.mxu0 0.0
        %1932 = vmatprep.subr.mxu0 0.0
        %1933 = vmatpush1.msra.mxu0 0.0
        %1934 = vmatprep.subr.mxu0 0.0
        %1935 = vmatpush1.msra.mxu0 0.0
        %1936 = vmatprep.subr.mxu0 0.0
        %1937 = vmatpush1.msra.mxu0 0.0
        %1938 = vmatprep.subr.mxu0 0.0
        %1939 = vmatpush1.msra.mxu0 0.0
        %1940 = vmatprep.subr.mxu0 0.0
        %1941 = vmatpush1.msra.mxu0 0.0
        %1942 = vmatprep.subr.mxu0 0.0
        %1943 = vmatpush1.msra.mxu0 0.0
        %1944 = vmatprep.subr.mxu0 0.0
        %1945 = vmatpush1.msra.mxu0 0.0
        %1946 = vmatprep.subr.mxu0 0.0
        %1947 = vmatpush1.msra.mxu0 0.0
        %1948 = vmatprep.subr.mxu0 0.0
        %1949 = vmatpush1.msra.mxu0 0.0
        %1950 = vmatprep.subr.mxu0 0.0
        %1951 = vmatpush1.msra.mxu0 0.0
        %1952 = vmatprep.subr.mxu0 0.0
        %1953 = vmatpush1.msra.mxu0 0.0
        %1954 = vmatprep.mubr.f32.mxu0 0.0
        %1955 = vmatmul.mubr.f32.gmra.mrb[0].mxu0 %v1873
        %v1956 = vpop.f32.mrb[0].mxu0
        %v1957 = vadd.f32 0.0, %v1956
        %v1958 = vpop.f32.mrb[0].mxu0
        %1959 = vdwg.mxu0
        %v1960 = vstv %s646
        %vm1961 = vcmp.eq.s32.totalorder %v1133, %v1960
        %vm1962 = vcmp.eq.s32.totalorder %v1134, %v1960
        %v1965 = vunpack.c.l.s4 1966171168
        %v1966 = vunpack.c.0.s8 %v1965
        %v1967 = vlaneseq
        %v1968 = vshrl.u32 %v1967, 7
        %v1969 = vsub.s32 %v1966, %v1968
        %v1970 = vrot.slane %v1957, %v1969
        %v1971 = vcombine.high %v1970, %v1970
        %v1973 = vunpack.c.l.s4 1966171168
        %v1974 = vunpack.c.0.s8 %v1973
        %v1975 = vlaneseq
        %v1976 = vshrl.u32 %v1975, 7
        %v1977 = vsub.s32 %v1974, %v1976
        %v1978 = vrot.slane %v1970, %v1977
        %v1980 = vunpack.c.l.s4 1966171168
        %v1981 = vunpack.c.0.s8 %v1980
        %v1982 = vlaneseq
        %v1983 = vshrl.u32 %v1982, 7
        %v1984 = vsub.s32 %v1981, %v1983
        %v1985 = vrot.slane %v1971, %v1984
        %v1986 = vld [vmem:[#allocation2] sm:$0xff]
        %v1987 = vld [vmem:[#allocation2 + $0x8] sm:$0xff]
        %v1988 = vld [vmem:[#allocation2 + $0x10] sm:$0xff]
        %v1989 = vld [vmem:[#allocation2 + $0x18] sm:$0xff]
        %v1990 = vlaneseq
        %v1991 = vshrl.u32 %v1990, 7
        %v1992 = vsub.s32 0, %v1991
        %v1993 = vrot.slane %v1978, %v1992
        %v1994 = vlaneseq
        %v1995 = vshrl.u32 %v1994, 7
        %v1996 = vsub.s32 0, %v1995
        %v1997 = vrot.slane %v1985, %v1996
        %v2000 = vsel %vm1961, %v1993, %v1986
        %v2001 = vsel %vm1962, %v1993, %v1987
        %v2002 = vsel %vm1961, %v1997, %v1988
        %v2003 = vsel %vm1962, %v1997, %v1989
        %2004 = vst.msk [vmem:[#allocation2] sm:$0xff] %vm672, %v2000
        %2005 = vst.msk [vmem:[#allocation2 + $0x8] sm:$0xff] %vm672, %v2001
        %2006 = vst.msk [vmem:[#allocation2 + $0x10] sm:$0xff] %vm672, %v2002
        %2007 = vst.msk [vmem:[#allocation2 + $0x18] sm:$0xff] %vm672, %v2003
        %s2008 = sand.u32 %s467, 1
        %s2009 = scalar_lea.sflag [#allocation4], %s2008
        %s2010 = sand.u32 %s467, 1
        %s2011 = smul.addr %s2010, 2
        %s2012 = scalar_lea.vmem [#allocation3], %s2011
        %s2013 = sand.u32 %s493, 1
        %s2014 = scalar_lea.sflag [#allocation6], %s2013
        %s2015 = sand.u32 %s493, 1
        %s2016 = smul.addr %s2015, 32
        %s2017 = scalar_lea.vmem [#allocation5], %s2016
        // Predicated region
        $region105: #{_gpt2_autoreg.1} parent=99 // pred_check
          %p2018 = pneg %p477
        $region106: #{_gpt2_autoreg.1} parent=99 // pred_check_branch
          %2020 = sbr.rel (%p2018) target = $region108
        $region107: #{_gpt2_autoreg.1} parent=99 // pred_region
          %s2022 = ssub.s32 32, 32
          %2023 = vsyncadd %s2009, %s2022
          %s2024 = smul.addr %s39, 32
          %s2025 = scalar_lea.hbm %s20, %s2024
          %s2027 = sshll.u32 %s2012, 4
          %s2028 = int_to_ptr.vmem [resolvable:$true] %s2027
          %2030 = dma.vmem_to_hbm [thread:$0]  %s2028, 32, %s2025, %s2009
        $region108: #{_gpt2_autoreg.1} parent=99 // pred_fallthru
          _
        // Predicated region
        $region109: #{_gpt2_autoreg.1} parent=99 // pred_check
          %p2031 = pneg %p503
        $region110: #{_gpt2_autoreg.1} parent=99 // pred_check_branch
          %2033 = sbr.rel (%p2031) target = $region112
        $region111: #{_gpt2_autoreg.1} parent=99 // pred_region
          %s2035 = ssub.s32 512, 512
          %2036 = vsyncadd %s2014, %s2035
          %s2037 = smul.addr %s39, 4
          %s2038 = smul.addr %s2037, 128
          %s2039 = scalar_lea.hbm %s21, %s2038
          %s2040 = sshll.u32 %s2017, 4
          %s2041 = int_to_ptr.vmem [resolvable:$true] %s2040
          %2046 = dma.vmem_to_hbm [thread:$0]  %s2041, 512, %s2039, %s2014, 128, 128, 8
        $region112: #{_gpt2_autoreg.1} parent=99 // pred_fallthru
          _
      $region100: #{_gpt2_autoreg.1} parent=5 // pred_fallthru
        _
      %p2047 = scmp.le.s32.totalorder 2, %s34
      // Predicated region
      $region113: #{_gpt2_autoreg.1} parent=5 // pred_check
        %p2048 = pneg %p2047
      $region114: #{_gpt2_autoreg.1} parent=5 // pred_check_branch
        %2050 = sbr.rel (%p2048) target = $region116
      $region115: #{_gpt2_autoreg.1} parent=5 // pred_region
        %s2051 = ssub.s32 %s34, 2
        // Predicated region
        $region117: #{_gpt2_autoreg.1} parent=115 // pred_check
          %p2052 = pneg %p483
        $region118: #{_gpt2_autoreg.1} parent=115 // pred_check_branch
          %2054 = sbr.rel (%p2052) target = $region120
        $region119: #{_gpt2_autoreg.1} parent=115 // pred_region
          %s2055 = sand.u32 %s468, 1
          %s2056 = scalar_lea.sflag [#allocation4], %s2055
          %s2057 = sand.u32 %s468, 1
          %s2058 = smul.addr %s2057, 2
          %s2059 = scalar_lea.vmem [#allocation3], %s2058
          %2060 = dma.done %s2056, 32
        $region120: #{_gpt2_autoreg.1} parent=115 // pred_fallthru
          _
        // Predicated region
        $region121: #{_gpt2_autoreg.1} parent=115 // pred_check
          %p2061 = pneg %p509
        $region122: #{_gpt2_autoreg.1} parent=115 // pred_check_branch
          %2063 = sbr.rel (%p2061) target = $region124
        $region123: #{_gpt2_autoreg.1} parent=115 // pred_region
          %s2064 = sand.u32 %s494, 1
          %s2065 = scalar_lea.sflag [#allocation6], %s2064
          %s2066 = sand.u32 %s494, 1
          %s2067 = smul.addr %s2066, 32
          %s2068 = scalar_lea.vmem [#allocation5], %s2067
          %2069 = dma.done %s2065, 512
        $region124: #{_gpt2_autoreg.1} parent=115 // pred_fallthru
          _
      $region116: #{_gpt2_autoreg.1} parent=5 // pred_fallthru
        _
    $region6: #{_gpt2_autoreg.1} parent=1 // loop_footer
      %s38 = sadd.s32 1, %s34
    $region7: #{_gpt2_autoreg.1} parent=1 // loop_footer_branch
      %33 = sbr.rel target = $region3
    $region8: #{_gpt2_autoreg.1} parent=1 // loop_exit
      _
    %2070 = vsyncpa [#allocation4], 1
    %s2071 = scalar_lea.sflag [#allocation4], 1
    %2072 = vsyncpa %s2071, 1
    %2073 = vsyncpa [#allocation6], 1
    %s2074 = scalar_lea.sflag [#allocation6], 1
    %2075 = vsyncpa %s2074, 1

</llo_original>
